<compile_context>
chip_gen: v7x
topology: tpu7x:2x2x1
jax: 0.10.0
libtpu: 0.0.40
codegen_flags: <defaults>
</compile_context>

<pallas_src>
import jax
import jax.numpy as jnp
from jax.experimental import pallas as pl
from jax.experimental.pallas import tpu as pltpu

# ----- model dims (scaled-down but structure-consistent with BertMLM) -----
TITLE_SIZE  = 256   # title_size  (768 in the original module)
VIDEO_SIZE  = 512   # video_size / feature_size (1536 in the original module)
HIDDEN_SIZE = 128   # hidden_size (256 in the original module)
LN_EPS = 1e-5
BN_EPS = 1e-5
L2_EPS = 1e-12

ROW_TILE = 1024       # LN / projection row tile (mem-bound: big tiles win)
TAIL_ROW_TILE = 512   # fused-tail row tile (bounds VMEM, enables v7x megacore)

# With the cross_encoder stubbed to identity only 2 rows per sample reach the
# tail, so by default we LayerNorm only those rows.  Flip to True to restore
# the full-sequence LN path (needed once a real encoder is plugged in).
FULL_SEQUENCE_LN = False


def _row_tile(rows, tile):
    # single full block when small, otherwise fixed tiles (masked last block ok)
    return rows if rows <= tile else tile


def _compiler_params(block_bytes, extra_bytes=0, dims=None):
    """Explicit scoped-VMEM budget: 2x (double buffering) per block + in-kernel
    intermediates + headroom; floored at 16 MiB and capped at 48 MiB (safe on
    v5e/v6e 128 MiB and v7x 64 MiB physical VMEM)."""
    limit = 2 * int(sum(block_bytes)) + int(extra_bytes) + (4 << 20)
    limit = max(min(limit, 48 << 20), 16 << 20)
    return pltpu.CompilerParams(dimension_semantics=dims, vmem_limit_bytes=limit)


# ---------------- Pallas kernels ----------------

def _proj_ln_kernel(x_ref, w_ref, b_ref, g_ref, beta_ref, o_ref):
    # title projection on the MXU (bf16 inputs, f32 accumulation) ...
    y = jnp.dot(x_ref[...].astype(jnp.bfloat16), w_ref[...],
                preferred_element_type=jnp.float32) + b_ref[...]
    # ... fused with a two-pass LayerNorm in f32 (matches torch numerics)
    mean = jnp.mean(y, axis=1, keepdims=True)
    xc = y - mean
    var = jnp.mean(xc * xc, axis=1, keepdims=True)
    o_ref[...] = (xc * jax.lax.rsqrt(var + LN_EPS) * g_ref[...]
                  + beta_ref[...]).astype(o_ref.dtype)


def proj_layernorm(x, w, b, gamma, beta):
    """LayerNorm(x @ w + b) -> bf16.  x:(N,K) f32, w:(K,M) bf16, b/g/beta:(M,)."""
    n, k = x.shape
    m = w.shape[1]
    tm = _row_tile(n, ROW_TILE)
    block_bytes = (tm * k * 4, k * m * 2, 3 * m * 4, tm * m * 2)
    extra = tm * m * 4  # in-kernel f32 projected tile
    return pl.pallas_call(
        _proj_ln_kernel,
        out_shape=jax.ShapeDtypeStruct((n, m), jnp.bfloat16),
        grid=(pl.cdiv(n, tm),),
        in_specs=[
            pl.BlockSpec((tm, k), lambda i: (i, 0)),   # row-tiled activation
            pl.BlockSpec((k, m), lambda i: (0, 0)),    # weight stays resident
            pl.BlockSpec((1, m), lambda i: (0, 0)),
            pl.BlockSpec((1, m), lambda i: (0, 0)),
            pl.BlockSpec((1, m), lambda i: (0, 0)),
        ],
        out_specs=pl.BlockSpec((tm, m), lambda i: (i, 0)),
        compiler_params=_compiler_params(block_bytes, extra, dims=("parallel",)),
    )(x, w, b.reshape(1, m), gamma.reshape(1, m), beta.reshape(1, m))


def _ln_kernel(x_ref, g_ref, b_ref, o_ref):
    x = x_ref[...]
    mean = jnp.mean(x, axis=1, keepdims=True)
    xc = x - mean
    var = jnp.mean(xc * xc, axis=1, keepdims=True)
    o_ref[...] = (xc * jax.lax.rsqrt(var + LN_EPS) * g_ref[...]
                  + b_ref[...]).astype(o_ref.dtype)


def layernorm(x, gamma, beta):
    """LayerNorm(x) -> bf16."""
    n, d = x.shape
    tm = _row_tile(n, ROW_TILE)
    block_bytes = (tm * d * 4, 2 * d * 4, tm * d * 2)
    return pl.pallas_call(
        _ln_kernel,
        out_shape=jax.ShapeDtypeStruct((n, d), jnp.bfloat16),
        grid=(pl.cdiv(n, tm),),
        in_specs=[
            pl.BlockSpec((tm, d), lambda i: (i, 0)),
            pl.BlockSpec((1, d), lambda i: (0, 0)),
            pl.BlockSpec((1, d), lambda i: (0, 0)),
        ],
        out_specs=pl.BlockSpec((tm, d), lambda i: (i, 0)),
        compiler_params=_compiler_params(block_bytes, dims=("parallel",)),
    )(x, gamma.reshape(1, d), beta.reshape(1, d))


def _l2norm_rows(x):
    # torch.nn.functional.normalize(p=2, dim=1): x / max(||x||_2, eps)
    # == x * rsqrt(max(sum(x^2), eps^2)); rsqrt goes to the (otherwise idle) EUP.
    sumsq = jnp.sum(x * x, axis=1, keepdims=True)
    return x * jax.lax.rsqrt(jnp.maximum(sumsq, L2_EPS * L2_EPS))


def _tail_kernel(vf_ref, tf_ref, wv_ref, wt_ref, bias_ref,
                 bn_scale_ref, bn_shift_ref, emb_ref):
    h = HIDDEN_SIZE
    # Two packed matmuls per row tile: columns = [ se1|se2 | fc2 | fc3 ].
    y = (jnp.dot(vf_ref[...], wv_ref[...], preferred_element_type=jnp.float32)
         + jnp.dot(tf_ref[...], wt_ref[...], preferred_element_type=jnp.float32)
         + bias_ref[...])
    # folded BatchNorm1d + Sigmoid on the se columns
    se = jax.nn.sigmoid(y[:, :2 * h] * bn_scale_ref[...] + bn_shift_ref[...])
    video_weight = se[:, :h]
    title_weight = se[:, h:2 * h]
    ve = y[:, 2 * h:3 * h]          # fc2(video_first)
    te = y[:, 3 * h:4 * h]          # fc3(title_first)
    # normalize -> weighted sum -> normalize
    emb = _l2norm_rows(ve) * video_weight + _l2norm_rows(te) * title_weight
    emb_ref[...] = _l2norm_rows(emb)


def tail(video_first, title_first, p):
    """se1+se2+fc2+fc3 (packed matmuls), BN+sigmoid, normalize+fuse — row-tiled."""
    b, d = video_first.shape
    h = HIDDEN_SIZE
    nout = 4 * h
    tb = _row_tile(b, TAIL_ROW_TILE)
    block_bytes = (2 * tb * d * 2,              # vf / tf bf16 row tiles
                   2 * d * nout * 2,            # packed bf16 weights (resident)
                   nout * 4 + 2 * (2 * h) * 4,  # bias + folded-BN scale/shift
                   tb * h * 4)                  # output tile f32
    extra = tb * nout * 4 + 3 * tb * h * 4      # y intermediate + se/ve/te temps
    return pl.pallas_call(
        _tail_kernel,
        out_shape=jax.ShapeDtypeStruct((b, h), jnp.float32),
        grid=(pl.cdiv(b, tb),),
        in_specs=[
            pl.BlockSpec((tb, d), lambda i: (i, 0)),
            pl.BlockSpec((tb, d), lambda i: (i, 0)),
            pl.BlockSpec((d, nout), lambda i: (0, 0)),
            pl.BlockSpec((d, nout), lambda i: (0, 0)),
            pl.BlockSpec((1, nout), lambda i: (0, 0)),
            pl.BlockSpec((1, 2 * h), lambda i: (0, 0)),
            pl.BlockSpec((1, 2 * h), lambda i: (0, 0)),
        ],
        out_specs=pl.BlockSpec((tb, h), lambda i: (i, 0)),
        compiler_params=_compiler_params(block_bytes, extra, dims=("parallel",)),
    )(video_first, title_first,
      p["wv_packed"], p["wt_packed"],
      p["bias_packed"].reshape(1, nout),
      p["se_bn_scale"].reshape(1, 2 * h),
      p["se_bn_shift"].reshape(1, 2 * h))


# ---------------- parameters & forward ----------------

def init_params(key):
    ks = jax.random.split(key, 10)

    def w(k, shape, scale=0.02):
        return scale * jax.random.normal(k, shape, jnp.float32)

    h, v, t = HIDDEN_SIZE, VIDEO_SIZE, TITLE_SIZE
    p = {}
    # MXU-facing weights stored in bf16 (f32 accumulation inside the kernels).
    p["linear_w"] = w(ks[0], (t, v)).astype(jnp.bfloat16)
    p["linear_b"] = w(ks[1], (v,), 0.01)
    p["ln_g"] = jnp.ones((v,), jnp.float32)
    p["ln_b"] = jnp.zeros((v,), jnp.float32)

    fc2_w = w(ks[2], (v, h)); fc2_b = w(ks[3], (h,), 0.01)
    fc3_w = w(ks[4], (v, h)); fc3_b = w(ks[5], (h,), 0.01)

    # Se heads: Linear(2*VIDEO -> HIDDEN) + BatchNorm1d; se1 and se2 merged
    # column-wise, then fc2/fc3 packed alongside so the tail issues exactly two
    # N=4*HIDDEN matmuls:  y = vf @ W_v + tf @ W_t + bias,
    # with columns [se1|se2 | fc2 | fc3] split at lane-128 boundaries.
    se1_w = w(ks[6], (2 * v, h)); se1_b = w(ks[7], (h,), 0.01)
    se2_w = w(ks[8], (2 * v, h)); se2_b = w(ks[9], (h,), 0.01)
    se_w = jnp.concatenate([se1_w, se2_w], axis=1)      # (2v, 2h)
    se_w_top, se_w_bot = se_w[:v], se_w[v:]              # (v, 2h) each
    zeros_vh = jnp.zeros((v, h), jnp.float32)
    p["wv_packed"] = jnp.concatenate([se_w_top, fc2_w, zeros_vh], axis=1).astype(jnp.bfloat16)
    p["wt_packed"] = jnp.concatenate([se_w_bot, zeros_vh, fc3_w], axis=1).astype(jnp.bfloat16)
    p["bias_packed"] = jnp.concatenate([se1_b, se2_b, fc2_b, fc3_b])

    # BatchNorm1d evaluated with PyTorch default stats/affine (running_mean=0,
    # running_var=1, weight=1, bias=0), folded into a single scale/shift.
    # TODO(synk): fold real trained running stats with the same formula.
    gamma = jnp.ones((2 * h,), jnp.float32)
    beta = jnp.zeros((2 * h,), jnp.float32)
    rmean = jnp.zeros((2 * h,), jnp.float32)
    rvar = jnp.ones((2 * h,), jnp.float32)
    scale = gamma * jax.lax.rsqrt(rvar + BN_EPS)
    p["se_bn_scale"] = scale
    p["se_bn_shift"] = beta - rmean * scale
    return p


def bert_mlm_forward(params, video_feature, frame_masks, title_feature):
    b, lv, _ = video_feature.shape
    _, lt, _ = title_feature.shape
    assert b % 2 == 0, "half-batch cosine requires an even batch"

    # TODO(synk): title_encoder / cross_encoder are AutoConfig-loaded BERT
    # encoders in the reference with no in-script Pallas equivalent; both are
    # stubbed as identity (encoder returns its input features / all-ones mask).
    title_mask = jnp.ones((b, lt), jnp.float32)
    _cat_masks = jnp.concatenate([frame_masks, title_mask], axis=1)  # cross_encoder-only input

    l = lv + lt
    mid = l // 2  # faithful to cross_features[:, l // 2, :] even when lv != lt

    if FULL_SEQUENCE_LN:
        # Full-sequence path (what a real cross_encoder would consume):
        # self.linear fused with self.ln for title rows, self.ln for video rows.
        title_ln = proj_layernorm(
            title_feature.reshape(-1, TITLE_SIZE),
            params["linear_w"], params["linear_b"],
            params["ln_g"], params["ln_b"]).reshape(b, lt, VIDEO_SIZE)
        video_ln = layernorm(
            video_feature.reshape(-1, VIDEO_SIZE),
            params["ln_g"], params["ln_b"]).reshape(b, lv, VIDEO_SIZE)
        video_first = video_ln[:, 0, :]
        title_first = video_ln[:, mid, :] if mid < lv else title_ln[:, mid - lv, :]
    else:
        # Identity cross_encoder: only rows 0 and mid of the concatenated
        # sequence are consumed downstream — LayerNorm just those b rows each.
        video_first = layernorm(video_feature[:, 0, :],
                                params["ln_g"], params["ln_b"])
        if mid < lv:
            title_first = layernorm(video_feature[:, mid, :],
                                    params["ln_g"], params["ln_b"])
        else:
            title_first = proj_layernorm(title_feature[:, mid - lv, :],
                                         params["linear_w"], params["linear_b"],
                                         params["ln_g"], params["ln_b"])

    # fused, row-tiled tail: se1+se2+fc2+fc3, BN+sigmoid, L2-normalize,
    # weighted fuse, final L2-normalize
    normed_embedding = tail(video_first, title_first, params)

    # half-batch cosine, lane-dense in plain JAX (tiny)
    cos = jnp.sum(normed_embedding[: b // 2] * normed_embedding[b // 2:], axis=1)
    return cos, normed_embedding


if __name__ == "__main__":
    key = jax.random.PRNGKey(0)
    k_p, k_v, k_t = jax.random.split(key, 3)

    B, LV, LT = 4, 4, 4   # B must be even (half-batch cosine)
    params = init_params(k_p)
    video_feature = jax.random.normal(k_v, (B, LV, VIDEO_SIZE), jnp.float32)
    frame_masks = jnp.ones((B, LV), jnp.float32)
    title_feature = jax.random.normal(k_t, (B, LT, TITLE_SIZE), jnp.float32)

    cos, emb = jax.jit(bert_mlm_forward)(params, video_feature, frame_masks, title_feature)
    jax.block_until_ready((cos, emb))

    assert cos.shape == (B // 2,), cos.shape
    assert emb.shape == (B, HIDDEN_SIZE), emb.shape
    assert bool(jnp.all(jnp.isfinite(cos))) and bool(jnp.all(jnp.isfinite(emb)))
    print("KERNEL_OK")
</pallas_src>

<mosaic_0001>
module attributes {stable_mosaic.version = 11 : i64} {
  func.func @_ln_kernel(%arg0: i32, %arg1: memref<4x512xf32, #tpu.memory_space<vmem>>, %arg2: memref<1x512xf32, #tpu.memory_space<vmem>>, %arg3: memref<1x512xf32, #tpu.memory_space<vmem>>, %arg4: memref<4x512xbf16, #tpu.memory_space<vmem>>) attributes {dimension_semantics = [#tpu.dimension_semantics<parallel>], iteration_bounds = array<i64: 1>, scalar_prefetch = 0 : i64, scratch_operands = 0 : i64, tpu.core_type = #tpu.core_type<tc>, window_params = [{transform_indices = @transform_0, window_bounds = array<i64: 4, 512>}, {pipeline_mode = #tpu.pipeline_mode<synchronous>, transform_indices = @transform_1, window_bounds = array<i64: 1, 512>}, {pipeline_mode = #tpu.pipeline_mode<synchronous>, transform_indices = @transform_2, window_bounds = array<i64: 1, 512>}, {transform_indices = @transform_3, window_bounds = array<i64: 4, 512>}]} {
    %c0 = arith.constant 0 : index
    %c0_0 = arith.constant 0 : index
    %0 = vector.load %arg1[%c0, %c0_0] : memref<4x512xf32, #tpu.memory_space<vmem>>, vector<4x512xf32>
    %cst = arith.constant dense<0.000000e+00> : vector<4xf32>
    %1 = vector.multi_reduction <add>, %0, %cst [1] : vector<4x512xf32> to vector<4xf32>
    %2 = vector.shape_cast %1 : vector<4xf32> to vector<4x1xf32>
    %cst_1 = arith.constant 5.120000e+02 : f32
    %3 = vector.broadcast %cst_1 : f32 to vector<4x1xf32>
    %4 = arith.divf %2, %3 : vector<4x1xf32>
    %5 = vector.broadcast %4 : vector<4x1xf32> to vector<4x512xf32>
    %6 = arith.subf %0, %5 : vector<4x512xf32>
    %7 = arith.mulf %6, %6 : vector<4x512xf32>
    %cst_2 = arith.constant dense<0.000000e+00> : vector<4xf32>
    %8 = vector.multi_reduction <add>, %7, %cst_2 [1] : vector<4x512xf32> to vector<4xf32>
    %9 = vector.shape_cast %8 : vector<4xf32> to vector<4x1xf32>
    %cst_3 = arith.constant 5.120000e+02 : f32
    %10 = vector.broadcast %cst_3 : f32 to vector<4x1xf32>
    %11 = arith.divf %9, %10 : vector<4x1xf32>
    %cst_4 = arith.constant 9.99999974E-6 : f32
    %12 = vector.broadcast %cst_4 : f32 to vector<4x1xf32>
    %13 = arith.addf %11, %12 : vector<4x1xf32>
    %14 = math.rsqrt %13 : vector<4x1xf32>
    %15 = vector.broadcast %14 : vector<4x1xf32> to vector<4x512xf32>
    %16 = arith.mulf %6, %15 : vector<4x512xf32>
    %c0_5 = arith.constant 0 : index
    %c0_6 = arith.constant 0 : index
    %17 = vector.load %arg2[%c0_5, %c0_6] : memref<1x512xf32, #tpu.memory_space<vmem>>, vector<1x512xf32>
    %18 = vector.broadcast %17 : vector<1x512xf32> to vector<4x512xf32>
    %19 = arith.mulf %16, %18 : vector<4x512xf32>
    %c0_7 = arith.constant 0 : index
    %c0_8 = arith.constant 0 : index
    %20 = vector.load %arg3[%c0_7, %c0_8] : memref<1x512xf32, #tpu.memory_space<vmem>>, vector<1x512xf32>
    %21 = vector.broadcast %20 : vector<1x512xf32> to vector<4x512xf32>
    %22 = arith.addf %19, %21 : vector<4x512xf32>
    %23 = arith.truncf %22 : vector<4x512xf32> to vector<4x512xbf16>
    %c0_9 = arith.constant 0 : index
    %c0_10 = arith.constant 0 : index
    %24 = vector.load %arg4[%c0_9, %c0_10] : memref<4x512xbf16, #tpu.memory_space<vmem>>, vector<4x512xbf16>
    tpu.vector_store %arg4[%c0_9, %c0_10], %23 {strides = array<i32>} : memref<4x512xbf16, #tpu.memory_space<vmem>>, vector<4x512xbf16>,
    return
  }
  func.func @transform_0(%arg0: i32) -> (i32, i32) {
    %c0_i32 = arith.constant 0 : i32
    %c0_i32_0 = arith.constant 0 : i32
    return %arg0, %c0_i32 : i32, i32
  }
  func.func @transform_1(%arg0: i32) -> (i32, i32) {
    %c0_i32 = arith.constant 0 : i32
    %c0_i32_0 = arith.constant 0 : i32
    %c0_i32_1 = arith.constant 0 : i32
    return %c0_i32, %c0_i32_0 : i32, i32
  }
  func.func @transform_2(%arg0: i32) -> (i32, i32) {
    %c0_i32 = arith.constant 0 : i32
    %c0_i32_0 = arith.constant 0 : i32
    %c0_i32_1 = arith.constant 0 : i32
    return %c0_i32, %c0_i32_0 : i32, i32
  }
  func.func @transform_3(%arg0: i32) -> (i32, i32) {
    %c0_i32 = arith.constant 0 : i32
    %c0_i32_0 = arith.constant 0 : i32
    return %arg0, %c0_i32 : i32, i32
  }
}

module attributes {stable_mosaic.version = 11 : i64} {
  func.func @_proj_ln_kernel(%arg0: i32, %arg1: memref<4x256xf32, #tpu.memory_space<vmem>>, %arg2: memref<256x512xbf16, #tpu.memory_space<vmem>>, %arg3: memref<1x512xf32, #tpu.memory_space<vmem>>, %arg4: memref<1x512xf32, #tpu.memory_space<vmem>>, %arg5: memref<1x512xf32, #tpu.memory_space<vmem>>, %arg6: memref<4x512xbf16, #tpu.memory_space<vmem>>) attributes {dimension_semantics = [#tpu.dimension_semantics<parallel>], iteration_bounds = array<i64: 1>, scalar_prefetch = 0 : i64, scratch_operands = 0 : i64, tpu.core_type = #tpu.core_type<tc>, window_params = [{transform_indices = @transform_0, window_bounds = array<i64: 4, 256>}, {pipeline_mode = #tpu.pipeline_mode<synchronous>, transform_indices = @transform_1, window_bounds = array<i64: 256, 512>}, {pipeline_mode = #tpu.pipeline_mode<synchronous>, transform_indices = @transform_2, window_bounds = array<i64: 1, 512>}, {pipeline_mode = #tpu.pipeline_mode<synchronous>, transform_indices = @transform_3, window_bounds = array<i64: 1, 512>}, {pipeline_mode = #tpu.pipeline_mode<synchronous>, transform_indices = @transform_4, window_bounds = array<i64: 1, 512>}, {transform_indices = @transform_5, window_bounds = array<i64: 4, 512>}]} {
    %c0 = arith.constant 0 : index
    %c0_0 = arith.constant 0 : index
    %0 = vector.load %arg1[%c0, %c0_0] : memref<4x256xf32, #tpu.memory_space<vmem>>, vector<4x256xf32>
    %1 = arith.truncf %0 : vector<4x256xf32> to vector<4x256xbf16>
    %c0_1 = arith.constant 0 : index
    %c0_2 = arith.constant 0 : index
    %2 = vector.load %arg2[%c0_1, %c0_2] : memref<256x512xbf16, #tpu.memory_space<vmem>>, vector<256x512xbf16>
    %cst = arith.constant dense<0.000000e+00> : vector<4x512xf32>
    %3 = tpu.matmul %1, %2, %cst {dimension_numbers = #tpu.dot_dimension_numbers<[1], [0], [0], [1], [0, 0, 1, 1], [], []>} : vector<4x256xbf16>, vector<256x512xbf16>, vector<4x512xf32> -> vector<4x512xf32>
    %c0_3 = arith.constant 0 : index
    %c0_4 = arith.constant 0 : index
    %4 = vector.load %arg3[%c0_3, %c0_4] : memref<1x512xf32, #tpu.memory_space<vmem>>, vector<1x512xf32>
    %5 = vector.broadcast %4 : vector<1x512xf32> to vector<4x512xf32>
    %6 = arith.addf %3, %5 : vector<4x512xf32>
    %cst_5 = arith.constant dense<0.000000e+00> : vector<4xf32>
    %7 = vector.multi_reduction <add>, %6, %cst_5 [1] : vector<4x512xf32> to vector<4xf32>
    %8 = vector.shape_cast %7 : vector<4xf32> to vector<4x1xf32>
    %cst_6 = arith.constant 5.120000e+02 : f32
    %9 = vector.broadcast %cst_6 : f32 to vector<4x1xf32>
    %10 = arith.divf %8, %9 : vector<4x1xf32>
    %11 = vector.broadcast %10 : vector<4x1xf32> to vector<4x512xf32>
    %12 = arith.subf %6, %11 : vector<4x512xf32>
    %13 = arith.mulf %12, %12 : vector<4x512xf32>
    %cst_7 = arith.constant dense<0.000000e+00> : vector<4xf32>
    %14 = vector.multi_reduction <add>, %13, %cst_7 [1] : vector<4x512xf32> to vector<4xf32>
    %15 = vector.shape_cast %14 : vector<4xf32> to vector<4x1xf32>
    %cst_8 = arith.constant 5.120000e+02 : f32
    %16 = vector.broadcast %cst_8 : f32 to vector<4x1xf32>
    %17 = arith.divf %15, %16 : vector<4x1xf32>
    %cst_9 = arith.constant 9.99999974E-6 : f32
    %18 = vector.broadcast %cst_9 : f32 to vector<4x1xf32>
    %19 = arith.addf %17, %18 : vector<4x1xf32>
    %20 = math.rsqrt %19 : vector<4x1xf32>
    %21 = vector.broadcast %20 : vector<4x1xf32> to vector<4x512xf32>
    %22 = arith.mulf %12, %21 : vector<4x512xf32>
    %c0_10 = arith.constant 0 : index
    %c0_11 = arith.constant 0 : index
    %23 = vector.load %arg4[%c0_10, %c0_11] : memref<1x512xf32, #tpu.memory_space<vmem>>, vector<1x512xf32>
    %24 = vector.broadcast %23 : vector<1x512xf32> to vector<4x512xf32>
    %25 = arith.mulf %22, %24 : vector<4x512xf32>
    %c0_12 = arith.constant 0 : index
    %c0_13 = arith.constant 0 : index
    %26 = vector.load %arg5[%c0_12, %c0_13] : memref<1x512xf32, #tpu.memory_space<vmem>>, vector<1x512xf32>
    %27 = vector.broadcast %26 : vector<1x512xf32> to vector<4x512xf32>
    %28 = arith.addf %25, %27 : vector<4x512xf32>
    %29 = arith.truncf %28 : vector<4x512xf32> to vector<4x512xbf16>
    %c0_14 = arith.constant 0 : index
    %c0_15 = arith.constant 0 : index
    %30 = vector.load %arg6[%c0_14, %c0_15] : memref<4x512xbf16, #tpu.memory_space<vmem>>, vector<4x512xbf16>
    tpu.vector_store %arg6[%c0_14, %c0_15], %29 {strides = array<i32>} : memref<4x512xbf16, #tpu.memory_space<vmem>>, vector<4x512xbf16>,
    return
  }
  func.func @transform_0(%arg0: i32) -> (i32, i32) {
    %c0_i32 = arith.constant 0 : i32
    %c0_i32_0 = arith.constant 0 : i32
    return %arg0, %c0_i32 : i32, i32
  }
  func.func @transform_1(%arg0: i32) -> (i32, i32) {
    %c0_i32 = arith.constant 0 : i32
    %c0_i32_0 = arith.constant 0 : i32
    %c0_i32_1 = arith.constant 0 : i32
    return %c0_i32, %c0_i32_0 : i32, i32
  }
  func.func @transform_2(%arg0: i32) -> (i32, i32) {
    %c0_i32 = arith.constant 0 : i32
    %c0_i32_0 = arith.constant 0 : i32
    %c0_i32_1 = arith.constant 0 : i32
    return %c0_i32, %c0_i32_0 : i32, i32
  }
  func.func @transform_3(%arg0: i32) -> (i32, i32) {
    %c0_i32 = arith.constant 0 : i32
    %c0_i32_0 = arith.constant 0 : i32
    %c0_i32_1 = arith.constant 0 : i32
    return %c0_i32, %c0_i32_0 : i32, i32
  }
  func.func @transform_4(%arg0: i32) -> (i32, i32) {
    %c0_i32 = arith.constant 0 : i32
    %c0_i32_0 = arith.constant 0 : i32
    %c0_i32_1 = arith.constant 0 : i32
    return %c0_i32, %c0_i32_0 : i32, i32
  }
  func.func @transform_5(%arg0: i32) -> (i32, i32) {
    %c0_i32 = arith.constant 0 : i32
    %c0_i32_0 = arith.constant 0 : i32
    return %arg0, %c0_i32 : i32, i32
  }
}

module attributes {stable_mosaic.version = 11 : i64} {
  func.func @_tail_kernel(%arg0: i32, %arg1: memref<4x512xbf16, #tpu.memory_space<vmem>>, %arg2: memref<4x512xbf16, #tpu.memory_space<vmem>>, %arg3: memref<512x512xbf16, #tpu.memory_space<vmem>>, %arg4: memref<512x512xbf16, #tpu.memory_space<vmem>>, %arg5: memref<1x512xf32, #tpu.memory_space<vmem>>, %arg6: memref<1x256xf32, #tpu.memory_space<vmem>>, %arg7: memref<1x256xf32, #tpu.memory_space<vmem>>, %arg8: memref<4x128xf32, #tpu.memory_space<vmem>>) attributes {dimension_semantics = [#tpu.dimension_semantics<parallel>], iteration_bounds = array<i64: 1>, scalar_prefetch = 0 : i64, scratch_operands = 0 : i64, tpu.core_type = #tpu.core_type<tc>, window_params = [{transform_indices = @transform_0, window_bounds = array<i64: 4, 512>}, {transform_indices = @transform_1, window_bounds = array<i64: 4, 512>}, {pipeline_mode = #tpu.pipeline_mode<synchronous>, transform_indices = @transform_2, window_bounds = array<i64: 512, 512>}, {pipeline_mode = #tpu.pipeline_mode<synchronous>, transform_indices = @transform_3, window_bounds = array<i64: 512, 512>}, {pipeline_mode = #tpu.pipeline_mode<synchronous>, transform_indices = @transform_4, window_bounds = array<i64: 1, 512>}, {pipeline_mode = #tpu.pipeline_mode<synchronous>, transform_indices = @transform_5, window_bounds = array<i64: 1, 256>}, {pipeline_mode = #tpu.pipeline_mode<synchronous>, transform_indices = @transform_6, window_bounds = array<i64: 1, 256>}, {transform_indices = @transform_7, window_bounds = array<i64: 4, 128>}]} {
    %c0 = arith.constant 0 : index
    %c0_0 = arith.constant 0 : index
    %0 = vector.load %arg1[%c0, %c0_0] : memref<4x512xbf16, #tpu.memory_space<vmem>>, vector<4x512xbf16>
    %c0_1 = arith.constant 0 : index
    %c0_2 = arith.constant 0 : index
    %1 = vector.load %arg3[%c0_1, %c0_2] : memref<512x512xbf16, #tpu.memory_space<vmem>>, vector<512x512xbf16>
    %cst = arith.constant dense<0.000000e+00> : vector<4x512xf32>
    %2 = tpu.matmul %0, %1, %cst {dimension_numbers = #tpu.dot_dimension_numbers<[1], [0], [0], [1], [0, 0, 1, 1], [], []>} : vector<4x512xbf16>, vector<512x512xbf16>, vector<4x512xf32> -> vector<4x512xf32>
    %c0_3 = arith.constant 0 : index
    %c0_4 = arith.constant 0 : index
    %3 = vector.load %arg2[%c0_3, %c0_4] : memref<4x512xbf16, #tpu.memory_space<vmem>>, vector<4x512xbf16>
    %c0_5 = arith.constant 0 : index
    %c0_6 = arith.constant 0 : index
    %4 = vector.load %arg4[%c0_5, %c0_6] : memref<512x512xbf16, #tpu.memory_space<vmem>>, vector<512x512xbf16>
    %cst_7 = arith.constant dense<0.000000e+00> : vector<4x512xf32>
    %5 = tpu.matmul %3, %4, %cst_7 {dimension_numbers = #tpu.dot_dimension_numbers<[1], [0], [0], [1], [0, 0, 1, 1], [], []>} : vector<4x512xbf16>, vector<512x512xbf16>, vector<4x512xf32> -> vector<4x512xf32>
    %6 = arith.addf %2, %5 : vector<4x512xf32>
    %c0_8 = arith.constant 0 : index
    %c0_9 = arith.constant 0 : index
    %7 = vector.load %arg5[%c0_8, %c0_9] : memref<1x512xf32, #tpu.memory_space<vmem>>, vector<1x512xf32>
    %8 = vector.broadcast %7 : vector<1x512xf32> to vector<4x512xf32>
    %9 = arith.addf %6, %8 : vector<4x512xf32>
    %10 = vector.extract_strided_slice %9 {offsets = [0, 0], sizes = [4, 256], strides = [1, 1]} : vector<4x512xf32> to vector<4x256xf32>
    %c0_10 = arith.constant 0 : index
    %c0_11 = arith.constant 0 : index
    %11 = vector.load %arg6[%c0_10, %c0_11] : memref<1x256xf32, #tpu.memory_space<vmem>>, vector<1x256xf32>
    %12 = vector.broadcast %11 : vector<1x256xf32> to vector<4x256xf32>
    %13 = arith.mulf %10, %12 : vector<4x256xf32>
    %c0_12 = arith.constant 0 : index
    %c0_13 = arith.constant 0 : index
    %14 = vector.load %arg7[%c0_12, %c0_13] : memref<1x256xf32, #tpu.memory_space<vmem>>, vector<1x256xf32>
    %15 = vector.broadcast %14 : vector<1x256xf32> to vector<4x256xf32>
    %16 = arith.addf %13, %15 : vector<4x256xf32>
    %17 = arith.negf %16 : vector<4x256xf32>
    %18 = math.exp %17 : vector<4x256xf32>
    %cst_14 = arith.constant 1.000000e+00 : f32
    %19 = vector.broadcast %cst_14 : f32 to vector<4x256xf32>
    %20 = arith.addf %19, %18 : vector<4x256xf32>
    %21 = arith.divf %19, %20 : vector<4x256xf32>
    %22 = vector.extract_strided_slice %21 {offsets = [0, 0], sizes = [4, 128], strides = [1, 1]} : vector<4x256xf32> to vector<4x128xf32>
    %23 = vector.extract_strided_slice %21 {offsets = [0, 128], sizes = [4, 128], strides = [1, 1]} : vector<4x256xf32> to vector<4x128xf32>
    %24 = vector.extract_strided_slice %9 {offsets = [0, 256], sizes = [4, 128], strides = [1, 1]} : vector<4x512xf32> to vector<4x128xf32>
    %25 = vector.extract_strided_slice %9 {offsets = [0, 384], sizes = [4, 128], strides = [1, 1]} : vector<4x512xf32> to vector<4x128xf32>
    %26 = arith.mulf %24, %24 : vector<4x128xf32>
    %cst_15 = arith.constant dense<0.000000e+00> : vector<4xf32>
    %27 = vector.multi_reduction <add>, %26, %cst_15 [1] : vector<4x128xf32> to vector<4xf32>
    %28 = vector.shape_cast %27 : vector<4xf32> to vector<4x1xf32>
    %cst_16 = arith.constant 1.000000e-24 : f32
    %29 = vector.broadcast %cst_16 : f32 to vector<4x1xf32>
    %30 = arith.maximumf %28, %29 : vector<4x1xf32>
    %31 = math.rsqrt %30 : vector<4x1xf32>
    %32 = vector.broadcast %31 : vector<4x1xf32> to vector<4x128xf32>
    %33 = arith.mulf %24, %32 : vector<4x128xf32>
    %34 = arith.mulf %33, %22 : vector<4x128xf32>
    %35 = arith.mulf %25, %25 : vector<4x128xf32>
    %cst_17 = arith.constant dense<0.000000e+00> : vector<4xf32>
    %36 = vector.multi_reduction <add>, %35, %cst_17 [1] : vector<4x128xf32> to vector<4xf32>
    %37 = vector.shape_cast %36 : vector<4xf32> to vector<4x1xf32>
    %cst_18 = arith.constant 1.000000e-24 : f32
    %38 = vector.broadcast %cst_18 : f32 to vector<4x1xf32>
    %39 = arith.maximumf %37, %38 : vector<4x1xf32>
    %40 = math.rsqrt %39 : vector<4x1xf32>
    %41 = vector.broadcast %40 : vector<4x1xf32> to vector<4x128xf32>
    %42 = arith.mulf %25, %41 : vector<4x128xf32>
    %43 = arith.mulf %42, %23 : vector<4x128xf32>
    %44 = arith.addf %34, %43 : vector<4x128xf32>
    %45 = arith.mulf %44, %44 : vector<4x128xf32>
    %cst_19 = arith.constant dense<0.000000e+00> : vector<4xf32>
    %46 = vector.multi_reduction <add>, %45, %cst_19 [1] : vector<4x128xf32> to vector<4xf32>
    %47 = vector.shape_cast %46 : vector<4xf32> to vector<4x1xf32>
    %cst_20 = arith.constant 1.000000e-24 : f32
    %48 = vector.broadcast %cst_20 : f32 to vector<4x1xf32>
    %49 = arith.maximumf %47, %48 : vector<4x1xf32>
    %50 = math.rsqrt %49 : vector<4x1xf32>
    %51 = vector.broadcast %50 : vector<4x1xf32> to vector<4x128xf32>
    %52 = arith.mulf %44, %51 : vector<4x128xf32>
    %c0_21 = arith.constant 0 : index
    %c0_22 = arith.constant 0 : index
    %53 = vector.load %arg8[%c0_21, %c0_22] : memref<4x128xf32, #tpu.memory_space<vmem>>, vector<4x128xf32>
    tpu.vector_store %arg8[%c0_21, %c0_22], %52 {strides = array<i32>} : memref<4x128xf32, #tpu.memory_space<vmem>>, vector<4x128xf32>,
    return
  }
  func.func @transform_0(%arg0: i32) -> (i32, i32) {
    %c0_i32 = arith.constant 0 : i32
    %c0_i32_0 = arith.constant 0 : i32
    return %arg0, %c0_i32 : i32, i32
  }
  func.func @transform_1(%arg0: i32) -> (i32, i32) {
    %c0_i32 = arith.constant 0 : i32
    %c0_i32_0 = arith.constant 0 : i32
    return %arg0, %c0_i32 : i32, i32
  }
  func.func @transform_2(%arg0: i32) -> (i32, i32) {
    %c0_i32 = arith.constant 0 : i32
    %c0_i32_0 = arith.constant 0 : i32
    %c0_i32_1 = arith.constant 0 : i32
    return %c0_i32, %c0_i32_0 : i32, i32
  }
  func.func @transform_3(%arg0: i32) -> (i32, i32) {
    %c0_i32 = arith.constant 0 : i32
    %c0_i32_0 = arith.constant 0 : i32
    %c0_i32_1 = arith.constant 0 : i32
    return %c0_i32, %c0_i32_0 : i32, i32
  }
  func.func @transform_4(%arg0: i32) -> (i32, i32) {
    %c0_i32 = arith.constant 0 : i32
    %c0_i32_0 = arith.constant 0 : i32
    %c0_i32_1 = arith.constant 0 : i32
    return %c0_i32, %c0_i32_0 : i32, i32
  }
  func.func @transform_5(%arg0: i32) -> (i32, i32) {
    %c0_i32 = arith.constant 0 : i32
    %c0_i32_0 = arith.constant 0 : i32
    %c0_i32_1 = arith.constant 0 : i32
    return %c0_i32, %c0_i32_0 : i32, i32
  }
  func.func @transform_6(%arg0: i32) -> (i32, i32) {
    %c0_i32 = arith.constant 0 : i32
    %c0_i32_0 = arith.constant 0 : i32
    %c0_i32_1 = arith.constant 0 : i32
    return %c0_i32, %c0_i32_0 : i32, i32
  }
  func.func @transform_7(%arg0: i32) -> (i32, i32) {
    %c0_i32 = arith.constant 0 : i32
    %c0_i32_0 = arith.constant 0 : i32
    return %arg0, %c0_i32 : i32, i32
  }
}

</mosaic_0001>

<llo_original>
// kernel: bert_mlm_forward.3
$region0: #{bert_mlm_forward.3}
  #allocation0 [shape = 'u32[]', space=smem, size = 0x4, offset = 0x4, fixed_abs, tag = 'smem constant byte address 0x4 - core index']
  #allocation1 [shape = 'u32[144,128]{1,0:T(1,128)}', space=vmem, size = 0x12000, scoped, tag = 'internal scratch']
  %s0 = inlined_call_operand.vmem [shape: f32[4,512], index: 0, kind: input, shape index: {}]
  %s1 = inlined_call_operand.vmem [shape: f32[1,512], index: 1, kind: input, shape index: {}]
  %s2 = inlined_call_operand.vmem [shape: f32[1,512], index: 2, kind: input, shape index: {}]
  %s3 = inlined_call_operand.vmem [shape: bf16[4,512], index: 3, kind: output, shape index: {}]
  %s4 = sld [smem:[#allocation0]]
  $region22: #{bert_mlm_forward.3} parent=0
    _
  %s6 = ssub.s32 1, %s4
  %s7 = scalar_select 0, %s6, %s4
  // Predicated region
  $region2: #{bert_mlm_forward.3} parent=0 // pred_check
    _
  $region3: #{bert_mlm_forward.3} parent=0 // pred_check_branch
    %9 = sbr.rel (0) target = $region5
  $region4: #{bert_mlm_forward.3} parent=0 // pred_region
    _
  $region5: #{bert_mlm_forward.3} parent=0 // pred_fallthru
    _
  // Predicated region
  $region6: #{bert_mlm_forward.3} parent=0 // pred_check
    _
  $region7: #{bert_mlm_forward.3} parent=0 // pred_check_branch
    %11 = sbr.rel (0) target = $region9
  $region8: #{bert_mlm_forward.3} parent=0 // pred_region
    _
  $region9: #{bert_mlm_forward.3} parent=0 // pred_fallthru
    _
  // Predicated region
  $region10: #{bert_mlm_forward.3} parent=0 // pred_check
    _
  $region11: #{bert_mlm_forward.3} parent=0 // pred_check_branch
    %13 = sbr.rel (0) target = $region13
  $region12: #{bert_mlm_forward.3} parent=0 // pred_region
    _
  $region13: #{bert_mlm_forward.3} parent=0 // pred_fallthru
    _
  %v14 = vld [vmem:[%s0] sm:$0xff]
  %v15 = vld [vmem:[%s0 + $0x8] sm:$0xff]
  %v18 = vcombine.high %v14, %v14
  %v19 = vcombine.high %v15, %v15
  %vm22 = vcmask 1043456
  %v23 = vsel %vm22, %v14, 0.0
  %v24 = vsel %vm22, %v18, 0.0
  %v25 = vadd.f32 %v23, %v24
  %v26 = vsel %vm22, %v15, 0.0
  %v27 = vadd.f32 %v25, %v26
  %v28 = vsel %vm22, %v19, 0.0
  %v29 = vadd.f32 %v27, %v28
  %30 = vadd.xlane.f32.xlu0 %v29
  %v31 = vpop.xlane.xlu0 %30
  %v32 = vrcp.pop 512.0
  %v33 = vmul.f32 %v31, %v32
  %v36 = vunpack.c.l.s4 839922192
  %v37 = vunpack.c.0.s8 %v36
  %v38 = vlaneseq
  %v39 = vshrl.u32 %v38, 7
  %v40 = vsub.s32 %v37, %v39
  %v41 = vrot.slane %v33, %v40
  %v43 = vsub.f32 %v14, %v41
  %v44 = vsub.f32 %v15, %v41
  %v45 = vmul.f32 %v43, %v43
  %v46 = vmul.f32 %v44, %v44
  %v49 = vcombine.high %v45, %v45
  %v50 = vcombine.high %v46, %v46
  %v53 = vsel %vm22, %v45, 0.0
  %v54 = vsel %vm22, %v49, 0.0
  %v55 = vadd.f32 %v53, %v54
  %v56 = vsel %vm22, %v46, 0.0
  %v57 = vadd.f32 %v55, %v56
  %v58 = vsel %vm22, %v50, 0.0
  %v59 = vadd.f32 %v57, %v58
  %60 = vadd.xlane.f32.xlu0 %v59
  %v61 = vpop.xlane.xlu0 %60
  %v62 = vmul.f32 %v61, %v32
  %v63 = vadd.f32 %v62, 1e-05
  %v64 = vrsqrt.pop %v63
  %v67 = vunpack.c.l.s4 839922192
  %v68 = vunpack.c.0.s8 %v67
  %v69 = vlaneseq
  %v70 = vshrl.u32 %v69, 7
  %v71 = vsub.s32 %v68, %v70
  %v72 = vrot.slane %v64, %v71
  %v74 = vmul.f32 %v43, %v72
  %v75 = vmul.f32 %v44, %v72
  %v76 = vld [vmem:[%s1] sm:$0xf]
  %v78 = vlaneseq
  %v79 = vshrl.u32 %v78, 7
  %v80 = vsub.s32 0, %v79
  %v81 = vrot.slane %v76, %v80
  %v82 = vlaneseq
  %v83 = vshrl.u32 %v82, 7
  %v84 = vsub.s32 1, %v83
  %v85 = vrot.slane %v76, %v84
  %v86 = vlaneseq
  %v87 = vshrl.u32 %v86, 7
  %v88 = vsub.s32 2, %v87
  %v89 = vrot.slane %v76, %v88
  %v90 = vlaneseq
  %v91 = vshrl.u32 %v90, 7
  %v92 = vsub.s32 3, %v91
  %v93 = vrot.slane %v76, %v92
  %v94 = vcombine.low %v81, %v85
  %v95 = vcombine.low %v89, %v93
  %v98 = vmul.f32 %v74, %v94
  %v99 = vmul.f32 %v75, %v95
  %v100 = vld [vmem:[%s2] sm:$0xf]
  %v102 = vlaneseq
  %v103 = vshrl.u32 %v102, 7
  %v104 = vsub.s32 0, %v103
  %v105 = vrot.slane %v100, %v104
  %v106 = vlaneseq
  %v107 = vshrl.u32 %v106, 7
  %v108 = vsub.s32 1, %v107
  %v109 = vrot.slane %v100, %v108
  %v110 = vlaneseq
  %v111 = vshrl.u32 %v110, 7
  %v112 = vsub.s32 2, %v111
  %v113 = vrot.slane %v100, %v112
  %v114 = vlaneseq
  %v115 = vshrl.u32 %v114, 7
  %v116 = vsub.s32 3, %v115
  %v117 = vrot.slane %v100, %v116
  %v118 = vcombine.low %v105, %v109
  %v119 = vcombine.low %v113, %v117
  %v122 = vadd.f32 %v98, %v118
  %v123 = vadd.f32 %v99, %v119
  %v126 = vcombine.high %v122, %v122
  %v127 = vcombine.high %v123, %v123
  %v130 = vpack.c.bf16 %v122, %v122
  %v131 = vpack.c.bf16 %v126, %v126
  %v132 = vpack.c.bf16 %v123, %v123
  %v133 = vpack.c.bf16 %v127, %v127
  %v138 = vcombine.low %v130, %v131
  %v139 = vcombine.low %v132, %v133
  %v141 = vunpack.c.l.s4 1983009808
  %v142 = vunpack.c.0.s8 %v141
  %v143 = vlaneseq
  %v144 = vshrl.u32 %v143, 7
  %v145 = vsub.s32 %v142, %v144
  %v146 = vrot.slane %v138, %v145
  %v148 = vunpack.c.l.s4 1983009808
  %v149 = vunpack.c.0.s8 %v148
  %v150 = vlaneseq
  %v151 = vshrl.u32 %v150, 7
  %v152 = vsub.s32 %v149, %v151
  %v153 = vrot.slane %v139, %v152
  %v154 = vcombine.low %v146, %v153
  %156 = vst [vmem:[%s3] sm:$0xff] %v154
  // Predicated region
  $region14: #{bert_mlm_forward.3} parent=0 // pred_check
    _
  $region15: #{bert_mlm_forward.3} parent=0 // pred_check_branch
    %158 = sbr.rel (0) target = $region17
  $region16: #{bert_mlm_forward.3} parent=0 // pred_region
    _
  $region17: #{bert_mlm_forward.3} parent=0 // pred_fallthru
    _
  // Predicated region
  $region18: #{bert_mlm_forward.3} parent=0 // pred_check
    _
  $region19: #{bert_mlm_forward.3} parent=0 // pred_check_branch
    %160 = sbr.rel (0) target = $region21
  $region20: #{bert_mlm_forward.3} parent=0 // pred_region
    _
  $region21: #{bert_mlm_forward.3} parent=0 // pred_fallthru
    _

// kernel: bert_mlm_forward.4
$region0: #{bert_mlm_forward.4}
  #allocation0 [shape = 'u32[]', space=smem, size = 0x4, offset = 0x4, fixed_abs, tag = 'smem constant byte address 0x4 - core index']
  #allocation1 [shape = 'u32[144,128]{1,0:T(1,128)}', space=vmem, size = 0x12000, scoped, tag = 'internal scratch']
  %s0 = inlined_call_operand.vmem [shape: f32[4,256], index: 0, kind: input, shape index: {}]
  %s1 = inlined_call_operand.hbm [shape: bf16[256,512], index: 1, kind: input, shape index: {}]
  %s2 = inlined_call_operand.vmem [shape: f32[1,512], index: 2, kind: input, shape index: {}]
  %s3 = inlined_call_operand.vmem [shape: f32[1,512], index: 3, kind: input, shape index: {}]
  %s4 = inlined_call_operand.vmem [shape: f32[1,512], index: 4, kind: input, shape index: {}]
  %s5 = inlined_call_operand.vmem [shape: bf16[4,512], index: 5, kind: output, shape index: {}]
  %s6 = sld [smem:[#allocation0]]
  $region34: #{bert_mlm_forward.4} parent=0
    _
  %s8 = ssub.s32 1, %s6
  %s9 = scalar_select 0, %s8, %s6
  $region1: #{bert_mlm_forward.4} parent=0
    #allocation2 [shape = 'u8[262144]{0}', space=vmem, size = 0x40000, scoped, tag = 'input window, operand 1, single buffered']
    #allocation3 [shape = 's32[1]{0}', space=sflag, size = 0x4, scoped, tag = 'scoped memory for bert_mlm_forward.4']
    %10 = vsyncpa [#allocation3], 0
    // Predicated region
    $region2: #{bert_mlm_forward.4} parent=1 // pred_check
      _
    $region3: #{bert_mlm_forward.4} parent=1 // pred_check_branch
      %12 = sbr.rel (0) target = $region5
    $region4: #{bert_mlm_forward.4} parent=1 // pred_region
      _
    $region5: #{bert_mlm_forward.4} parent=1 // pred_fallthru
      _
    // Predicated region
    $region6: #{bert_mlm_forward.4} parent=1 // pred_check
      _
    $region7: #{bert_mlm_forward.4} parent=1 // pred_check_branch
      %14 = sbr.rel (0) target = $region9
    $region8: #{bert_mlm_forward.4} parent=1 // pred_region
      %s16 = ssub.s32 8192, 8192
      %17 = vsyncadd [#allocation3], %s16
      %s18 = sshll.u32 [#allocation2], 4
      %s19 = int_to_ptr.vmem [resolvable:$true] %s18
      %24 = dma.hbm_to_vmem [thread:$0]  %s1, 8192, %s19, [#allocation3], 256, 256, 16
    $region9: #{bert_mlm_forward.4} parent=1 // pred_fallthru
      _
    // Predicated region
    $region10: #{bert_mlm_forward.4} parent=1 // pred_check
      _
    $region11: #{bert_mlm_forward.4} parent=1 // pred_check_branch
      %26 = sbr.rel (0) target = $region13
    $region12: #{bert_mlm_forward.4} parent=1 // pred_region
      _
    $region13: #{bert_mlm_forward.4} parent=1 // pred_fallthru
      _
    // Predicated region
    $region14: #{bert_mlm_forward.4} parent=1 // pred_check
      _
    $region15: #{bert_mlm_forward.4} parent=1 // pred_check_branch
      %28 = sbr.rel (0) target = $region17
    $region16: #{bert_mlm_forward.4} parent=1 // pred_region
      _
    $region17: #{bert_mlm_forward.4} parent=1 // pred_fallthru
      _
    // Predicated region
    $region18: #{bert_mlm_forward.4} parent=1 // pred_check
      _
    $region19: #{bert_mlm_forward.4} parent=1 // pred_check_branch
      %30 = sbr.rel (0) target = $region21
    $region20: #{bert_mlm_forward.4} parent=1 // pred_region
      _
    $region21: #{bert_mlm_forward.4} parent=1 // pred_fallthru
      _
    // Predicated region
    $region22: #{bert_mlm_forward.4} parent=1 // pred_check
      _
    $region23: #{bert_mlm_forward.4} parent=1 // pred_check_branch
      %32 = sbr.rel (0) target = $region25
    $region24: #{bert_mlm_forward.4} parent=1 // pred_region
      %33 = dma.done [#allocation3], 8192
    $region25: #{bert_mlm_forward.4} parent=1 // pred_fallthru
      _
    %v34 = vld [vmem:[%s0] sm:$0xff]
    %v36 = vcombine.high %v34, %v34
    %v38 = vpack.c.bf16 %v34, %v34
    %v39 = vpack.c.bf16 %v36, %v36
    %v40 = vld [vmem:[#allocation2] sm:$0xff]
    %v41 = vld [vmem:[#allocation2 + $0x8] sm:$0xff]
    %v42 = vld [vmem:[#allocation2 + $0x10] sm:$0xff]
    %v43 = vld [vmem:[#allocation2 + $0x18] sm:$0xff]
    %v44 = vld [vmem:[#allocation2 + $0x20] sm:$0xff]
    %v45 = vld [vmem:[#allocation2 + $0x28] sm:$0xff]
    %v46 = vld [vmem:[#allocation2 + $0x30] sm:$0xff]
    %v47 = vld [vmem:[#allocation2 + $0x38] sm:$0xff]
    %v48 = vld [vmem:[#allocation2 + $0x40] sm:$0xff]
    %v49 = vld [vmem:[#allocation2 + $0x48] sm:$0xff]
    %v50 = vld [vmem:[#allocation2 + $0x50] sm:$0xff]
    %v51 = vld [vmem:[#allocation2 + $0x58] sm:$0xff]
    %v52 = vld [vmem:[#allocation2 + $0x60] sm:$0xff]
    %v53 = vld [vmem:[#allocation2 + $0x68] sm:$0xff]
    %v54 = vld [vmem:[#allocation2 + $0x70] sm:$0xff]
    %v55 = vld [vmem:[#allocation2 + $0x78] sm:$0xff]
    %v56 = vld [vmem:[#allocation2 + $0x80] sm:$0xff]
    %v57 = vld [vmem:[#allocation2 + $0x88] sm:$0xff]
    %v58 = vld [vmem:[#allocation2 + $0x90] sm:$0xff]
    %v59 = vld [vmem:[#allocation2 + $0x98] sm:$0xff]
    %v60 = vld [vmem:[#allocation2 + $0xa0] sm:$0xff]
    %v61 = vld [vmem:[#allocation2 + $0xa8] sm:$0xff]
    %v62 = vld [vmem:[#allocation2 + $0xb0] sm:$0xff]
    %v63 = vld [vmem:[#allocation2 + $0xb8] sm:$0xff]
    %v64 = vld [vmem:[#allocation2 + $0xc0] sm:$0xff]
    %v65 = vld [vmem:[#allocation2 + $0xc8] sm:$0xff]
    %v66 = vld [vmem:[#allocation2 + $0xd0] sm:$0xff]
    %v67 = vld [vmem:[#allocation2 + $0xd8] sm:$0xff]
    %v68 = vld [vmem:[#allocation2 + $0xe0] sm:$0xff]
    %v69 = vld [vmem:[#allocation2 + $0xe8] sm:$0xff]
    %v70 = vld [vmem:[#allocation2 + $0xf0] sm:$0xff]
    %v71 = vld [vmem:[#allocation2 + $0xf8] sm:$0xff]
    %v72 = vld [vmem:[#allocation2 + $0x100] sm:$0xff]
    %v73 = vld [vmem:[#allocation2 + $0x108] sm:$0xff]
    %v74 = vld [vmem:[#allocation2 + $0x110] sm:$0xff]
    %v75 = vld [vmem:[#allocation2 + $0x118] sm:$0xff]
    %v76 = vld [vmem:[#allocation2 + $0x120] sm:$0xff]
    %v77 = vld [vmem:[#allocation2 + $0x128] sm:$0xff]
    %v78 = vld [vmem:[#allocation2 + $0x130] sm:$0xff]
    %v79 = vld [vmem:[#allocation2 + $0x138] sm:$0xff]
    %v80 = vld [vmem:[#allocation2 + $0x140] sm:$0xff]
    %v81 = vld [vmem:[#allocation2 + $0x148] sm:$0xff]
    %v82 = vld [vmem:[#allocation2 + $0x150] sm:$0xff]
    %v83 = vld [vmem:[#allocation2 + $0x158] sm:$0xff]
    %v84 = vld [vmem:[#allocation2 + $0x160] sm:$0xff]
    %v85 = vld [vmem:[#allocation2 + $0x168] sm:$0xff]
    %v86 = vld [vmem:[#allocation2 + $0x170] sm:$0xff]
    %v87 = vld [vmem:[#allocation2 + $0x178] sm:$0xff]
    %v88 = vld [vmem:[#allocation2 + $0x180] sm:$0xff]
    %v89 = vld [vmem:[#allocation2 + $0x188] sm:$0xff]
    %v90 = vld [vmem:[#allocation2 + $0x190] sm:$0xff]
    %v91 = vld [vmem:[#allocation2 + $0x198] sm:$0xff]
    %v92 = vld [vmem:[#allocation2 + $0x1a0] sm:$0xff]
    %v93 = vld [vmem:[#allocation2 + $0x1a8] sm:$0xff]
    %v94 = vld [vmem:[#allocation2 + $0x1b0] sm:$0xff]
    %v95 = vld [vmem:[#allocation2 + $0x1b8] sm:$0xff]
    %v96 = vld [vmem:[#allocation2 + $0x1c0] sm:$0xff]
    %v97 = vld [vmem:[#allocation2 + $0x1c8] sm:$0xff]
    %v98 = vld [vmem:[#allocation2 + $0x1d0] sm:$0xff]
    %v99 = vld [vmem:[#allocation2 + $0x1d8] sm:$0xff]
    %v100 = vld [vmem:[#allocation2 + $0x1e0] sm:$0xff]
    %v101 = vld [vmem:[#allocation2 + $0x1e8] sm:$0xff]
    %v102 = vld [vmem:[#allocation2 + $0x1f0] sm:$0xff]
    %v103 = vld [vmem:[#allocation2 + $0x1f8] sm:$0xff]
    %v104 = vld [vmem:[%s2] sm:$0xf]
    %v106 = vlaneseq
    %v107 = vshrl.u32 %v106, 7
    %v108 = vsub.s32 0, %v107
    %v109 = vrot.slane %v104, %v108
    %v110 = vlaneseq
    %v111 = vshrl.u32 %v110, 7
    %v112 = vsub.s32 1, %v111
    %v113 = vrot.slane %v104, %v112
    %v114 = vlaneseq
    %v115 = vshrl.u32 %v114, 7
    %v116 = vsub.s32 2, %v115
    %v117 = vrot.slane %v104, %v116
    %v118 = vlaneseq
    %v119 = vshrl.u32 %v118, 7
    %v120 = vsub.s32 3, %v119
    %v121 = vrot.slane %v104, %v120
    %v190 = vunpack.c.l.b16 %v40
    %v191 = vunpack.c.h.b16 %v40
    %v192 = vunpack.c.l.b16 %v41
    %v193 = vunpack.c.h.b16 %v41
    %v194 = vunpack.c.l.b16 %v42
    %v195 = vunpack.c.h.b16 %v42
    %v196 = vunpack.c.l.b16 %v43
    %v197 = vunpack.c.h.b16 %v43
    %v198 = vunpack.c.l.b16 %v44
    %v199 = vunpack.c.h.b16 %v44
    %v200 = vunpack.c.l.b16 %v45
    %v201 = vunpack.c.h.b16 %v45
    %v202 = vunpack.c.l.b16 %v46
    %v203 = vunpack.c.h.b16 %v46
    %v204 = vunpack.c.l.b16 %v47
    %v205 = vunpack.c.h.b16 %v47
    %v206 = vunpack.c.l.b16 %v48
    %v207 = vunpack.c.h.b16 %v48
    %v208 = vunpack.c.l.b16 %v49
    %v209 = vunpack.c.h.b16 %v49
    %v210 = vunpack.c.l.b16 %v50
    %v211 = vunpack.c.h.b16 %v50
    %v212 = vunpack.c.l.b16 %v51
    %v213 = vunpack.c.h.b16 %v51
    %v214 = vunpack.c.l.b16 %v52
    %v215 = vunpack.c.h.b16 %v52
    %v216 = vunpack.c.l.b16 %v53
    %v217 = vunpack.c.h.b16 %v53
    %v218 = vunpack.c.l.b16 %v54
    %v219 = vunpack.c.h.b16 %v54
    %v220 = vunpack.c.l.b16 %v55
    %v221 = vunpack.c.h.b16 %v55
    %v222 = vunpack.c.l.b16 %v56
    %v223 = vunpack.c.h.b16 %v56
    %v224 = vunpack.c.l.b16 %v57
    %v225 = vunpack.c.h.b16 %v57
    %v226 = vunpack.c.l.b16 %v58
    %v227 = vunpack.c.h.b16 %v58
    %v228 = vunpack.c.l.b16 %v59
    %v229 = vunpack.c.h.b16 %v59
    %v230 = vunpack.c.l.b16 %v60
    %v231 = vunpack.c.h.b16 %v60
    %v232 = vunpack.c.l.b16 %v61
    %v233 = vunpack.c.h.b16 %v61
    %v234 = vunpack.c.l.b16 %v62
    %v235 = vunpack.c.h.b16 %v62
    %v236 = vunpack.c.l.b16 %v63
    %v237 = vunpack.c.h.b16 %v63
    %v238 = vunpack.c.l.b16 %v64
    %v239 = vunpack.c.h.b16 %v64
    %v240 = vunpack.c.l.b16 %v65
    %v241 = vunpack.c.h.b16 %v65
    %v242 = vunpack.c.l.b16 %v66
    %v243 = vunpack.c.h.b16 %v66
    %v244 = vunpack.c.l.b16 %v67
    %v245 = vunpack.c.h.b16 %v67
    %v246 = vunpack.c.l.b16 %v68
    %v247 = vunpack.c.h.b16 %v68
    %v248 = vunpack.c.l.b16 %v69
    %v249 = vunpack.c.h.b16 %v69
    %v250 = vunpack.c.l.b16 %v70
    %v251 = vunpack.c.h.b16 %v70
    %v252 = vunpack.c.l.b16 %v71
    %v253 = vunpack.c.h.b16 %v71
    %v254 = vunpack.c.l.b16 %v72
    %v255 = vunpack.c.h.b16 %v72
    %v256 = vunpack.c.l.b16 %v73
    %v257 = vunpack.c.h.b16 %v73
    %v258 = vunpack.c.l.b16 %v74
    %v259 = vunpack.c.h.b16 %v74
    %v260 = vunpack.c.l.b16 %v75
    %v261 = vunpack.c.h.b16 %v75
    %v262 = vunpack.c.l.b16 %v76
    %v263 = vunpack.c.h.b16 %v76
    %v264 = vunpack.c.l.b16 %v77
    %v265 = vunpack.c.h.b16 %v77
    %v266 = vunpack.c.l.b16 %v78
    %v267 = vunpack.c.h.b16 %v78
    %v268 = vunpack.c.l.b16 %v79
    %v269 = vunpack.c.h.b16 %v79
    %v270 = vunpack.c.l.b16 %v80
    %v271 = vunpack.c.h.b16 %v80
    %v272 = vunpack.c.l.b16 %v81
    %v273 = vunpack.c.h.b16 %v81
    %v274 = vunpack.c.l.b16 %v82
    %v275 = vunpack.c.h.b16 %v82
    %v276 = vunpack.c.l.b16 %v83
    %v277 = vunpack.c.h.b16 %v83
    %v278 = vunpack.c.l.b16 %v84
    %v279 = vunpack.c.h.b16 %v84
    %v280 = vunpack.c.l.b16 %v85
    %v281 = vunpack.c.h.b16 %v85
    %v282 = vunpack.c.l.b16 %v86
    %v283 = vunpack.c.h.b16 %v86
    %v284 = vunpack.c.l.b16 %v87
    %v285 = vunpack.c.h.b16 %v87
    %v286 = vunpack.c.l.b16 %v88
    %v287 = vunpack.c.h.b16 %v88
    %v288 = vunpack.c.l.b16 %v89
    %v289 = vunpack.c.h.b16 %v89
    %v290 = vunpack.c.l.b16 %v90
    %v291 = vunpack.c.h.b16 %v90
    %v292 = vunpack.c.l.b16 %v91
    %v293 = vunpack.c.h.b16 %v91
    %v294 = vunpack.c.l.b16 %v92
    %v295 = vunpack.c.h.b16 %v92
    %v296 = vunpack.c.l.b16 %v93
    %v297 = vunpack.c.h.b16 %v93
    %v298 = vunpack.c.l.b16 %v94
    %v299 = vunpack.c.h.b16 %v94
    %v300 = vunpack.c.l.b16 %v95
    %v301 = vunpack.c.h.b16 %v95
    %v302 = vunpack.c.l.b16 %v96
    %v303 = vunpack.c.h.b16 %v96
    %v304 = vunpack.c.l.b16 %v97
    %v305 = vunpack.c.h.b16 %v97
    %v306 = vunpack.c.l.b16 %v98
    %v307 = vunpack.c.h.b16 %v98
    %v308 = vunpack.c.l.b16 %v99
    %v309 = vunpack.c.h.b16 %v99
    %v310 = vunpack.c.l.b16 %v100
    %v311 = vunpack.c.h.b16 %v100
    %v312 = vunpack.c.l.b16 %v101
    %v313 = vunpack.c.h.b16 %v101
    %v314 = vunpack.c.l.b16 %v102
    %v315 = vunpack.c.h.b16 %v102
    %v316 = vunpack.c.l.b16 %v103
    %v317 = vunpack.c.h.b16 %v103
    %v318 = vpack.c.b16 %v194, %v190
    %v319 = vpack.c.b16 %v195, %v191
    %v320 = vpack.c.b16 %v196, %v192
    %v321 = vpack.c.b16 %v197, %v193
    %v322 = vpack.c.b16 %v202, %v198
    %v323 = vpack.c.b16 %v203, %v199
    %v324 = vpack.c.b16 %v204, %v200
    %v325 = vpack.c.b16 %v205, %v201
    %v326 = vpack.c.b16 %v210, %v206
    %v327 = vpack.c.b16 %v211, %v207
    %v328 = vpack.c.b16 %v212, %v208
    %v329 = vpack.c.b16 %v213, %v209
    %v330 = vpack.c.b16 %v218, %v214
    %v331 = vpack.c.b16 %v219, %v215
    %v332 = vpack.c.b16 %v220, %v216
    %v333 = vpack.c.b16 %v221, %v217
    %v334 = vpack.c.b16 %v226, %v222
    %v335 = vpack.c.b16 %v227, %v223
    %v336 = vpack.c.b16 %v228, %v224
    %v337 = vpack.c.b16 %v229, %v225
    %v338 = vpack.c.b16 %v234, %v230
    %v339 = vpack.c.b16 %v235, %v231
    %v340 = vpack.c.b16 %v236, %v232
    %v341 = vpack.c.b16 %v237, %v233
    %v342 = vpack.c.b16 %v242, %v238
    %v343 = vpack.c.b16 %v243, %v239
    %v344 = vpack.c.b16 %v244, %v240
    %v345 = vpack.c.b16 %v245, %v241
    %v346 = vpack.c.b16 %v250, %v246
    %v347 = vpack.c.b16 %v251, %v247
    %v348 = vpack.c.b16 %v252, %v248
    %v349 = vpack.c.b16 %v253, %v249
    %v350 = vpack.c.b16 %v258, %v254
    %v351 = vpack.c.b16 %v259, %v255
    %v352 = vpack.c.b16 %v260, %v256
    %v353 = vpack.c.b16 %v261, %v257
    %v354 = vpack.c.b16 %v266, %v262
    %v355 = vpack.c.b16 %v267, %v263
    %v356 = vpack.c.b16 %v268, %v264
    %v357 = vpack.c.b16 %v269, %v265
    %v358 = vpack.c.b16 %v274, %v270
    %v359 = vpack.c.b16 %v275, %v271
    %v360 = vpack.c.b16 %v276, %v272
    %v361 = vpack.c.b16 %v277, %v273
    %v362 = vpack.c.b16 %v282, %v278
    %v363 = vpack.c.b16 %v283, %v279
    %v364 = vpack.c.b16 %v284, %v280
    %v365 = vpack.c.b16 %v285, %v281
    %v366 = vpack.c.b16 %v290, %v286
    %v367 = vpack.c.b16 %v291, %v287
    %v368 = vpack.c.b16 %v292, %v288
    %v369 = vpack.c.b16 %v293, %v289
    %v370 = vpack.c.b16 %v298, %v294
    %v371 = vpack.c.b16 %v299, %v295
    %v372 = vpack.c.b16 %v300, %v296
    %v373 = vpack.c.b16 %v301, %v297
    %v374 = vpack.c.b16 %v306, %v302
    %v375 = vpack.c.b16 %v307, %v303
    %v376 = vpack.c.b16 %v308, %v304
    %v377 = vpack.c.b16 %v309, %v305
    %v378 = vpack.c.b16 %v314, %v310
    %v379 = vpack.c.b16 %v315, %v311
    %v380 = vpack.c.b16 %v316, %v312
    %v381 = vpack.c.b16 %v317, %v313
    %446 = vmatprep.subr.bf16.mxu0 %v319
    %447 = vmatpush1.bf16.msra.mxu0 %v318
    %448 = vmatprep.subr.bf16.mxu0 %v323
    %449 = vmatpush1.bf16.msra.mxu0 %v322
    %450 = vmatprep.subr.bf16.mxu0 %v327
    %451 = vmatpush1.bf16.msra.mxu0 %v326
    %452 = vmatprep.subr.bf16.mxu0 %v331
    %453 = vmatpush1.bf16.msra.mxu0 %v330
    %454 = vmatprep.subr.bf16.mxu0 %v335
    %455 = vmatpush1.bf16.msra.mxu0 %v334
    %456 = vmatprep.subr.bf16.mxu0 %v339
    %457 = vmatpush1.bf16.msra.mxu0 %v338
    %458 = vmatprep.subr.bf16.mxu0 %v343
    %459 = vmatpush1.bf16.msra.mxu0 %v342
    %460 = vmatprep.subr.bf16.mxu0 %v347
    %461 = vmatpush1.bf16.msra.mxu0 %v346
    %462 = vmatprep.subr.bf16.mxu0 %v351
    %463 = vmatpush1.bf16.msra.mxu0 %v350
    %464 = vmatprep.subr.bf16.mxu0 %v355
    %465 = vmatpush1.bf16.msra.mxu0 %v354
    %466 = vmatprep.subr.bf16.mxu0 %v359
    %467 = vmatpush1.bf16.msra.mxu0 %v358
    %468 = vmatprep.subr.bf16.mxu0 %v363
    %469 = vmatpush1.bf16.msra.mxu0 %v362
    %470 = vmatprep.subr.bf16.mxu0 %v367
    %471 = vmatpush1.bf16.msra.mxu0 %v366
    %472 = vmatprep.subr.bf16.mxu0 %v371
    %473 = vmatpush1.bf16.msra.mxu0 %v370
    %474 = vmatprep.subr.bf16.mxu0 %v375
    %475 = vmatpush1.bf16.msra.mxu0 %v374
    %476 = vmatprep.subr.bf16.mxu0 %v379
    %477 = vmatpush1.bf16.msra.mxu0 %v378
    %478 = vmatprep.mubr.bf16.mxu0 %v39
    %479 = vmatmul.mubr.bf16.gmra.mrb[0].mxu0 %v38
    %v480 = vpop.f32.mrb[0].mxu0
    %v481 = vadd.f32 %v109, %v480
    %v482 = vpop.f32.mrb[0].mxu0
    %v483 = vadd.f32 %v113, %v482
    %v484 = vpop.f32.mrb[0].mxu0
    %v485 = vpop.f32.mrb[0].mxu0
    %486 = vdwg.mxu0
    %487 = vmatprep.subr.bf16.mxu0 %v321
    %488 = vmatpush1.bf16.msra.mxu0 %v320
    %489 = vmatprep.subr.bf16.mxu0 %v325
    %490 = vmatpush1.bf16.msra.mxu0 %v324
    %491 = vmatprep.subr.bf16.mxu0 %v329
    %492 = vmatpush1.bf16.msra.mxu0 %v328
    %493 = vmatprep.subr.bf16.mxu0 %v333
    %494 = vmatpush1.bf16.msra.mxu0 %v332
    %495 = vmatprep.subr.bf16.mxu0 %v337
    %496 = vmatpush1.bf16.msra.mxu0 %v336
    %497 = vmatprep.subr.bf16.mxu0 %v341
    %498 = vmatpush1.bf16.msra.mxu0 %v340
    %499 = vmatprep.subr.bf16.mxu0 %v345
    %500 = vmatpush1.bf16.msra.mxu0 %v344
    %501 = vmatprep.subr.bf16.mxu0 %v349
    %502 = vmatpush1.bf16.msra.mxu0 %v348
    %503 = vmatprep.subr.bf16.mxu0 %v353
    %504 = vmatpush1.bf16.msra.mxu0 %v352
    %505 = vmatprep.subr.bf16.mxu0 %v357
    %506 = vmatpush1.bf16.msra.mxu0 %v356
    %507 = vmatprep.subr.bf16.mxu0 %v361
    %508 = vmatpush1.bf16.msra.mxu0 %v360
    %509 = vmatprep.subr.bf16.mxu0 %v365
    %510 = vmatpush1.bf16.msra.mxu0 %v364
    %511 = vmatprep.subr.bf16.mxu0 %v369
    %512 = vmatpush1.bf16.msra.mxu0 %v368
    %513 = vmatprep.subr.bf16.mxu0 %v373
    %514 = vmatpush1.bf16.msra.mxu0 %v372
    %515 = vmatprep.subr.bf16.mxu0 %v377
    %516 = vmatpush1.bf16.msra.mxu0 %v376
    %517 = vmatprep.subr.bf16.mxu0 %v381
    %518 = vmatpush1.bf16.msra.mxu0 %v380
    %519 = vmatprep.mubr.bf16.mxu0 %v39
    %520 = vmatmul.mubr.bf16.gmra.mrb[0].mxu0 %v38
    %v521 = vpop.f32.mrb[0].mxu0
    %v522 = vadd.f32 %v117, %v521
    %v523 = vpop.f32.mrb[0].mxu0
    %v524 = vadd.f32 %v121, %v523
    %v525 = vpop.f32.mrb[0].mxu0
    %v526 = vpop.f32.mrb[0].mxu0
    %527 = vdwg.mxu0
    %vm528 = vcmask 1043456
    %v529 = vsel %vm528, %v481, 0.0
    %v530 = vsel %vm528, %v483, 0.0
    %v531 = vadd.f32 %v529, %v530
    %v532 = vsel %vm528, %v522, 0.0
    %v533 = vadd.f32 %v531, %v532
    %v534 = vsel %vm528, %v524, 0.0
    %v535 = vadd.f32 %v533, %v534
    %536 = vadd.xlane.f32.xlu0 %v535
    %v537 = vpop.xlane.xlu0 %536
    %v538 = vrcp.pop 512.0
    %v539 = vmul.f32 %v537, %v538
    %v540 = vsub.f32 %v481, %v539
    %v541 = vsub.f32 %v483, %v539
    %v542 = vsub.f32 %v522, %v539
    %v543 = vsub.f32 %v524, %v539
    %v544 = vmul.f32 %v540, %v540
    %v545 = vmul.f32 %v541, %v541
    %v546 = vmul.f32 %v542, %v542
    %v547 = vmul.f32 %v543, %v543
    %v548 = vsel %vm528, %v544, 0.0
    %v549 = vsel %vm528, %v545, 0.0
    %v550 = vadd.f32 %v548, %v549
    %v551 = vsel %vm528, %v546, 0.0
    %v552 = vadd.f32 %v550, %v551
    %v553 = vsel %vm528, %v547, 0.0
    %v554 = vadd.f32 %v552, %v553
    %555 = vadd.xlane.f32.xlu0 %v554
    %v556 = vpop.xlane.xlu0 %555
    %v557 = vmul.f32 %v556, %v538
    %v558 = vadd.f32 %v557, 1e-05
    %v559 = vrsqrt.pop %v558
    %v560 = vmul.f32 %v540, %v559
    %v561 = vmul.f32 %v541, %v559
    %v562 = vmul.f32 %v542, %v559
    %v563 = vmul.f32 %v543, %v559
    %v564 = vld [vmem:[%s3] sm:$0xf]
    %v566 = vlaneseq
    %v567 = vshrl.u32 %v566, 7
    %v568 = vsub.s32 0, %v567
    %v569 = vrot.slane %v564, %v568
    %v570 = vlaneseq
    %v571 = vshrl.u32 %v570, 7
    %v572 = vsub.s32 1, %v571
    %v573 = vrot.slane %v564, %v572
    %v574 = vlaneseq
    %v575 = vshrl.u32 %v574, 7
    %v576 = vsub.s32 2, %v575
    %v577 = vrot.slane %v564, %v576
    %v578 = vlaneseq
    %v579 = vshrl.u32 %v578, 7
    %v580 = vsub.s32 3, %v579
    %v581 = vrot.slane %v564, %v580
    %v586 = vmul.f32 %v560, %v569
    %v587 = vmul.f32 %v561, %v573
    %v588 = vmul.f32 %v562, %v577
    %v589 = vmul.f32 %v563, %v581
    %v590 = vld [vmem:[%s4] sm:$0xf]
    %v592 = vlaneseq
    %v593 = vshrl.u32 %v592, 7
    %v594 = vsub.s32 0, %v593
    %v595 = vrot.slane %v590, %v594
    %v596 = vlaneseq
    %v597 = vshrl.u32 %v596, 7
    %v598 = vsub.s32 1, %v597
    %v599 = vrot.slane %v590, %v598
    %v600 = vlaneseq
    %v601 = vshrl.u32 %v600, 7
    %v602 = vsub.s32 2, %v601
    %v603 = vrot.slane %v590, %v602
    %v604 = vlaneseq
    %v605 = vshrl.u32 %v604, 7
    %v606 = vsub.s32 3, %v605
    %v607 = vrot.slane %v590, %v606
    %v612 = vadd.f32 %v586, %v595
    %v613 = vadd.f32 %v587, %v599
    %v614 = vadd.f32 %v588, %v603
    %v615 = vadd.f32 %v589, %v607
    %v616 = vpack.c.bf16 %v612, %v612
    %v617 = vpack.c.bf16 %v613, %v613
    %v618 = vpack.c.bf16 %v614, %v614
    %v619 = vpack.c.bf16 %v615, %v615
    %v624 = vcombine.low %v616, %v617
    %v625 = vcombine.low %v618, %v619
    %v627 = vunpack.c.l.s4 1983009808
    %v628 = vunpack.c.0.s8 %v627
    %v629 = vlaneseq
    %v630 = vshrl.u32 %v629, 7
    %v631 = vsub.s32 %v628, %v630
    %v632 = vrot.slane %v624, %v631
    %v634 = vunpack.c.l.s4 1983009808
    %v635 = vunpack.c.0.s8 %v634
    %v636 = vlaneseq
    %v637 = vshrl.u32 %v636, 7
    %v638 = vsub.s32 %v635, %v637
    %v639 = vrot.slane %v625, %v638
    %v640 = vcombine.low %v632, %v639
    %642 = vst [vmem:[%s5] sm:$0xff] %v640
    // Predicated region
    $region26: #{bert_mlm_forward.4} parent=1 // pred_check
      _
    $region27: #{bert_mlm_forward.4} parent=1 // pred_check_branch
      %644 = sbr.rel (0) target = $region29
    $region28: #{bert_mlm_forward.4} parent=1 // pred_region
      _
    $region29: #{bert_mlm_forward.4} parent=1 // pred_fallthru
      _
    // Predicated region
    $region30: #{bert_mlm_forward.4} parent=1 // pred_check
      _
    $region31: #{bert_mlm_forward.4} parent=1 // pred_check_branch
      %646 = sbr.rel (0) target = $region33
    $region32: #{bert_mlm_forward.4} parent=1 // pred_region
      _
    $region33: #{bert_mlm_forward.4} parent=1 // pred_fallthru
      _
    %647 = vsyncpa [#allocation3], 1

// kernel: bert_mlm_forward.5
$region0: #{bert_mlm_forward.5}
  #allocation0 [shape = 'u32[]', space=smem, size = 0x4, offset = 0x4, fixed_abs, tag = 'smem constant byte address 0x4 - core index']
  #allocation1 [shape = 'u32[144,128]{1,0:T(1,128)}', space=vmem, size = 0x12000, scoped, tag = 'internal scratch']
  %s0 = inlined_call_operand.vmem [shape: bf16[4,512], index: 0, kind: input, shape index: {}]
  %s1 = inlined_call_operand.vmem [shape: bf16[4,512], index: 1, kind: input, shape index: {}]
  %s2 = inlined_call_operand.hbm [shape: bf16[512,512], index: 2, kind: input, shape index: {}]
  %s3 = inlined_call_operand.hbm [shape: bf16[512,512], index: 3, kind: input, shape index: {}]
  %s4 = inlined_call_operand.vmem [shape: f32[1,512], index: 4, kind: input, shape index: {}]
  %s5 = inlined_call_operand.vmem [shape: f32[1,256], index: 5, kind: input, shape index: {}]
  %s6 = inlined_call_operand.vmem [shape: f32[1,256], index: 6, kind: input, shape index: {}]
  %s7 = inlined_call_operand.vmem [shape: f32[4,128], index: 7, kind: output, shape index: {}]
  %s8 = sld [smem:[#allocation0]]
  $region46: #{bert_mlm_forward.5} parent=0
    _
  %s10 = ssub.s32 1, %s8
  %s11 = scalar_select 0, %s10, %s8
  $region1: #{bert_mlm_forward.5} parent=0
    #allocation2 [shape = 'u8[524288]{0}', space=vmem, size = 0x80000, scoped, tag = 'input window, operand 2, single buffered']
    #allocation3 [shape = 's32[1]{0}', space=sflag, size = 0x4, scoped, tag = 'scoped memory for bert_mlm_forward.5']
    #allocation4 [shape = 'u8[524288]{0}', space=vmem, size = 0x80000, scoped, tag = 'input window, operand 3, single buffered']
    #allocation5 [shape = 's32[1]{0}', space=sflag, size = 0x4, scoped, tag = 'scoped memory for bert_mlm_forward.5']
    %12 = vsyncpa [#allocation3], 0
    %13 = vsyncpa [#allocation5], 0
    // Predicated region
    $region2: #{bert_mlm_forward.5} parent=1 // pred_check
      _
    $region3: #{bert_mlm_forward.5} parent=1 // pred_check_branch
      %15 = sbr.rel (0) target = $region5
    $region4: #{bert_mlm_forward.5} parent=1 // pred_region
      _
    $region5: #{bert_mlm_forward.5} parent=1 // pred_fallthru
      _
    // Predicated region
    $region6: #{bert_mlm_forward.5} parent=1 // pred_check
      _
    $region7: #{bert_mlm_forward.5} parent=1 // pred_check_branch
      %17 = sbr.rel (0) target = $region9
    $region8: #{bert_mlm_forward.5} parent=1 // pred_region
      _
    $region9: #{bert_mlm_forward.5} parent=1 // pred_fallthru
      _
    // Predicated region
    $region10: #{bert_mlm_forward.5} parent=1 // pred_check
      _
    $region11: #{bert_mlm_forward.5} parent=1 // pred_check_branch
      %19 = sbr.rel (0) target = $region13
    $region12: #{bert_mlm_forward.5} parent=1 // pred_region
      %s21 = ssub.s32 16384, 16384
      %22 = vsyncadd [#allocation3], %s21
      %s23 = sshll.u32 [#allocation2], 4
      %s24 = int_to_ptr.vmem [resolvable:$true] %s23
      %29 = dma.hbm_to_vmem [thread:$0]  %s2, 16384, %s24, [#allocation3], 256, 256, 16
    $region13: #{bert_mlm_forward.5} parent=1 // pred_fallthru
      _
    // Predicated region
    $region14: #{bert_mlm_forward.5} parent=1 // pred_check
      _
    $region15: #{bert_mlm_forward.5} parent=1 // pred_check_branch
      %31 = sbr.rel (0) target = $region17
    $region16: #{bert_mlm_forward.5} parent=1 // pred_region
      %s33 = ssub.s32 16384, 16384
      %34 = vsyncadd [#allocation5], %s33
      %s35 = sshll.u32 [#allocation4], 4
      %s36 = int_to_ptr.vmem [resolvable:$true] %s35
      %41 = dma.hbm_to_vmem [thread:$0]  %s3, 16384, %s36, [#allocation5], 256, 256, 16
    $region17: #{bert_mlm_forward.5} parent=1 // pred_fallthru
      _
    // Predicated region
    $region18: #{bert_mlm_forward.5} parent=1 // pred_check
      _
    $region19: #{bert_mlm_forward.5} parent=1 // pred_check_branch
      %43 = sbr.rel (0) target = $region21
    $region20: #{bert_mlm_forward.5} parent=1 // pred_region
      _
    $region21: #{bert_mlm_forward.5} parent=1 // pred_fallthru
      _
    // Predicated region
    $region22: #{bert_mlm_forward.5} parent=1 // pred_check
      _
    $region23: #{bert_mlm_forward.5} parent=1 // pred_check_branch
      %45 = sbr.rel (0) target = $region25
    $region24: #{bert_mlm_forward.5} parent=1 // pred_region
      _
    $region25: #{bert_mlm_forward.5} parent=1 // pred_fallthru
      _
    // Predicated region
    $region26: #{bert_mlm_forward.5} parent=1 // pred_check
      _
    $region27: #{bert_mlm_forward.5} parent=1 // pred_check_branch
      %47 = sbr.rel (0) target = $region29
    $region28: #{bert_mlm_forward.5} parent=1 // pred_region
      _
    $region29: #{bert_mlm_forward.5} parent=1 // pred_fallthru
      _
    // Predicated region
    $region30: #{bert_mlm_forward.5} parent=1 // pred_check
      _
    $region31: #{bert_mlm_forward.5} parent=1 // pred_check_branch
      %49 = sbr.rel (0) target = $region33
    $region32: #{bert_mlm_forward.5} parent=1 // pred_region
      %50 = dma.done [#allocation3], 16384
    $region33: #{bert_mlm_forward.5} parent=1 // pred_fallthru
      _
    // Predicated region
    $region34: #{bert_mlm_forward.5} parent=1 // pred_check
      _
    $region35: #{bert_mlm_forward.5} parent=1 // pred_check_branch
      %52 = sbr.rel (0) target = $region37
    $region36: #{bert_mlm_forward.5} parent=1 // pred_region
      %53 = dma.done [#allocation5], 16384
    $region37: #{bert_mlm_forward.5} parent=1 // pred_fallthru
      _
    %v54 = vld [vmem:[%s0] sm:$0xff]
    %v55 = vld [vmem:[#allocation2] sm:$0xff]
    %v56 = vld [vmem:[#allocation2 + $0x8] sm:$0xff]
    %v57 = vld [vmem:[#allocation2 + $0x10] sm:$0xff]
    %v58 = vld [vmem:[#allocation2 + $0x18] sm:$0xff]
    %v59 = vld [vmem:[#allocation2 + $0x20] sm:$0xff]
    %v60 = vld [vmem:[#allocation2 + $0x28] sm:$0xff]
    %v61 = vld [vmem:[#allocation2 + $0x30] sm:$0xff]
    %v62 = vld [vmem:[#allocation2 + $0x38] sm:$0xff]
    %v63 = vld [vmem:[#allocation2 + $0x40] sm:$0xff]
    %v64 = vld [vmem:[#allocation2 + $0x48] sm:$0xff]
    %v65 = vld [vmem:[#allocation2 + $0x50] sm:$0xff]
    %v66 = vld [vmem:[#allocation2 + $0x58] sm:$0xff]
    %v67 = vld [vmem:[#allocation2 + $0x60] sm:$0xff]
    %v68 = vld [vmem:[#allocation2 + $0x68] sm:$0xff]
    %v69 = vld [vmem:[#allocation2 + $0x70] sm:$0xff]
    %v70 = vld [vmem:[#allocation2 + $0x78] sm:$0xff]
    %v71 = vld [vmem:[#allocation2 + $0x80] sm:$0xff]
    %v72 = vld [vmem:[#allocation2 + $0x88] sm:$0xff]
    %v73 = vld [vmem:[#allocation2 + $0x90] sm:$0xff]
    %v74 = vld [vmem:[#allocation2 + $0x98] sm:$0xff]
    %v75 = vld [vmem:[#allocation2 + $0xa0] sm:$0xff]
    %v76 = vld [vmem:[#allocation2 + $0xa8] sm:$0xff]
    %v77 = vld [vmem:[#allocation2 + $0xb0] sm:$0xff]
    %v78 = vld [vmem:[#allocation2 + $0xb8] sm:$0xff]
    %v79 = vld [vmem:[#allocation2 + $0xc0] sm:$0xff]
    %v80 = vld [vmem:[#allocation2 + $0xc8] sm:$0xff]
    %v81 = vld [vmem:[#allocation2 + $0xd0] sm:$0xff]
    %v82 = vld [vmem:[#allocation2 + $0xd8] sm:$0xff]
    %v83 = vld [vmem:[#allocation2 + $0xe0] sm:$0xff]
    %v84 = vld [vmem:[#allocation2 + $0xe8] sm:$0xff]
    %v85 = vld [vmem:[#allocation2 + $0xf0] sm:$0xff]
    %v86 = vld [vmem:[#allocation2 + $0xf8] sm:$0xff]
    %v87 = vld [vmem:[#allocation2 + $0x100] sm:$0xff]
    %v88 = vld [vmem:[#allocation2 + $0x108] sm:$0xff]
    %v89 = vld [vmem:[#allocation2 + $0x110] sm:$0xff]
    %v90 = vld [vmem:[#allocation2 + $0x118] sm:$0xff]
    %v91 = vld [vmem:[#allocation2 + $0x120] sm:$0xff]
    %v92 = vld [vmem:[#allocation2 + $0x128] sm:$0xff]
    %v93 = vld [vmem:[#allocation2 + $0x130] sm:$0xff]
    %v94 = vld [vmem:[#allocation2 + $0x138] sm:$0xff]
    %v95 = vld [vmem:[#allocation2 + $0x140] sm:$0xff]
    %v96 = vld [vmem:[#allocation2 + $0x148] sm:$0xff]
    %v97 = vld [vmem:[#allocation2 + $0x150] sm:$0xff]
    %v98 = vld [vmem:[#allocation2 + $0x158] sm:$0xff]
    %v99 = vld [vmem:[#allocation2 + $0x160] sm:$0xff]
    %v100 = vld [vmem:[#allocation2 + $0x168] sm:$0xff]
    %v101 = vld [vmem:[#allocation2 + $0x170] sm:$0xff]
    %v102 = vld [vmem:[#allocation2 + $0x178] sm:$0xff]
    %v103 = vld [vmem:[#allocation2 + $0x180] sm:$0xff]
    %v104 = vld [vmem:[#allocation2 + $0x188] sm:$0xff]
    %v105 = vld [vmem:[#allocation2 + $0x190] sm:$0xff]
    %v106 = vld [vmem:[#allocation2 + $0x198] sm:$0xff]
    %v107 = vld [vmem:[#allocation2 + $0x1a0] sm:$0xff]
    %v108 = vld [vmem:[#allocation2 + $0x1a8] sm:$0xff]
    %v109 = vld [vmem:[#allocation2 + $0x1b0] sm:$0xff]
    %v110 = vld [vmem:[#allocation2 + $0x1b8] sm:$0xff]
    %v111 = vld [vmem:[#allocation2 + $0x1c0] sm:$0xff]
    %v112 = vld [vmem:[#allocation2 + $0x1c8] sm:$0xff]
    %v113 = vld [vmem:[#allocation2 + $0x1d0] sm:$0xff]
    %v114 = vld [vmem:[#allocation2 + $0x1d8] sm:$0xff]
    %v115 = vld [vmem:[#allocation2 + $0x1e0] sm:$0xff]
    %v116 = vld [vmem:[#allocation2 + $0x1e8] sm:$0xff]
    %v117 = vld [vmem:[#allocation2 + $0x1f0] sm:$0xff]
    %v118 = vld [vmem:[#allocation2 + $0x1f8] sm:$0xff]
    %v119 = vld [vmem:[#allocation2 + $0x200] sm:$0xff]
    %v120 = vld [vmem:[#allocation2 + $0x208] sm:$0xff]
    %v121 = vld [vmem:[#allocation2 + $0x210] sm:$0xff]
    %v122 = vld [vmem:[#allocation2 + $0x218] sm:$0xff]
    %v123 = vld [vmem:[#allocation2 + $0x220] sm:$0xff]
    %v124 = vld [vmem:[#allocation2 + $0x228] sm:$0xff]
    %v125 = vld [vmem:[#allocation2 + $0x230] sm:$0xff]
    %v126 = vld [vmem:[#allocation2 + $0x238] sm:$0xff]
    %v127 = vld [vmem:[#allocation2 + $0x240] sm:$0xff]
    %v128 = vld [vmem:[#allocation2 + $0x248] sm:$0xff]
    %v129 = vld [vmem:[#allocation2 + $0x250] sm:$0xff]
    %v130 = vld [vmem:[#allocation2 + $0x258] sm:$0xff]
    %v131 = vld [vmem:[#allocation2 + $0x260] sm:$0xff]
    %v132 = vld [vmem:[#allocation2 + $0x268] sm:$0xff]
    %v133 = vld [vmem:[#allocation2 + $0x270] sm:$0xff]
    %v134 = vld [vmem:[#allocation2 + $0x278] sm:$0xff]
    %v135 = vld [vmem:[#allocation2 + $0x280] sm:$0xff]
    %v136 = vld [vmem:[#allocation2 + $0x288] sm:$0xff]
    %v137 = vld [vmem:[#allocation2 + $0x290] sm:$0xff]
    %v138 = vld [vmem:[#allocation2 + $0x298] sm:$0xff]
    %v139 = vld [vmem:[#allocation2 + $0x2a0] sm:$0xff]
    %v140 = vld [vmem:[#allocation2 + $0x2a8] sm:$0xff]
    %v141 = vld [vmem:[#allocation2 + $0x2b0] sm:$0xff]
    %v142 = vld [vmem:[#allocation2 + $0x2b8] sm:$0xff]
    %v143 = vld [vmem:[#allocation2 + $0x2c0] sm:$0xff]
    %v144 = vld [vmem:[#allocation2 + $0x2c8] sm:$0xff]
    %v145 = vld [vmem:[#allocation2 + $0x2d0] sm:$0xff]
    %v146 = vld [vmem:[#allocation2 + $0x2d8] sm:$0xff]
    %v147 = vld [vmem:[#allocation2 + $0x2e0] sm:$0xff]
    %v148 = vld [vmem:[#allocation2 + $0x2e8] sm:$0xff]
    %v149 = vld [vmem:[#allocation2 + $0x2f0] sm:$0xff]
    %v150 = vld [vmem:[#allocation2 + $0x2f8] sm:$0xff]
    %v151 = vld [vmem:[#allocation2 + $0x300] sm:$0xff]
    %v152 = vld [vmem:[#allocation2 + $0x308] sm:$0xff]
    %v153 = vld [vmem:[#allocation2 + $0x310] sm:$0xff]
    %v154 = vld [vmem:[#allocation2 + $0x318] sm:$0xff]
    %v155 = vld [vmem:[#allocation2 + $0x320] sm:$0xff]
    %v156 = vld [vmem:[#allocation2 + $0x328] sm:$0xff]
    %v157 = vld [vmem:[#allocation2 + $0x330] sm:$0xff]
    %v158 = vld [vmem:[#allocation2 + $0x338] sm:$0xff]
    %v159 = vld [vmem:[#allocation2 + $0x340] sm:$0xff]
    %v160 = vld [vmem:[#allocation2 + $0x348] sm:$0xff]
    %v161 = vld [vmem:[#allocation2 + $0x350] sm:$0xff]
    %v162 = vld [vmem:[#allocation2 + $0x358] sm:$0xff]
    %v163 = vld [vmem:[#allocation2 + $0x360] sm:$0xff]
    %v164 = vld [vmem:[#allocation2 + $0x368] sm:$0xff]
    %v165 = vld [vmem:[#allocation2 + $0x370] sm:$0xff]
    %v166 = vld [vmem:[#allocation2 + $0x378] sm:$0xff]
    %v167 = vld [vmem:[#allocation2 + $0x380] sm:$0xff]
    %v168 = vld [vmem:[#allocation2 + $0x388] sm:$0xff]
    %v169 = vld [vmem:[#allocation2 + $0x390] sm:$0xff]
    %v170 = vld [vmem:[#allocation2 + $0x398] sm:$0xff]
    %v171 = vld [vmem:[#allocation2 + $0x3a0] sm:$0xff]
    %v172 = vld [vmem:[#allocation2 + $0x3a8] sm:$0xff]
    %v173 = vld [vmem:[#allocation2 + $0x3b0] sm:$0xff]
    %v174 = vld [vmem:[#allocation2 + $0x3b8] sm:$0xff]
    %v175 = vld [vmem:[#allocation2 + $0x3c0] sm:$0xff]
    %v176 = vld [vmem:[#allocation2 + $0x3c8] sm:$0xff]
    %v177 = vld [vmem:[#allocation2 + $0x3d0] sm:$0xff]
    %v178 = vld [vmem:[#allocation2 + $0x3d8] sm:$0xff]
    %v179 = vld [vmem:[#allocation2 + $0x3e0] sm:$0xff]
    %v180 = vld [vmem:[#allocation2 + $0x3e8] sm:$0xff]
    %v181 = vld [vmem:[#allocation2 + $0x3f0] sm:$0xff]
    %v182 = vld [vmem:[#allocation2 + $0x3f8] sm:$0xff]
    %v183 = vld [vmem:[%s1] sm:$0xff]
    %v184 = vld [vmem:[#allocation4] sm:$0xff]
    %v185 = vld [vmem:[#allocation4 + $0x8] sm:$0xff]
    %v186 = vld [vmem:[#allocation4 + $0x10] sm:$0xff]
    %v187 = vld [vmem:[#allocation4 + $0x18] sm:$0xff]
    %v188 = vld [vmem:[#allocation4 + $0x20] sm:$0xff]
    %v189 = vld [vmem:[#allocation4 + $0x28] sm:$0xff]
    %v190 = vld [vmem:[#allocation4 + $0x30] sm:$0xff]
    %v191 = vld [vmem:[#allocation4 + $0x38] sm:$0xff]
    %v192 = vld [vmem:[#allocation4 + $0x40] sm:$0xff]
    %v193 = vld [vmem:[#allocation4 + $0x48] sm:$0xff]
    %v194 = vld [vmem:[#allocation4 + $0x50] sm:$0xff]
    %v195 = vld [vmem:[#allocation4 + $0x58] sm:$0xff]
    %v196 = vld [vmem:[#allocation4 + $0x60] sm:$0xff]
    %v197 = vld [vmem:[#allocation4 + $0x68] sm:$0xff]
    %v198 = vld [vmem:[#allocation4 + $0x70] sm:$0xff]
    %v199 = vld [vmem:[#allocation4 + $0x78] sm:$0xff]
    %v200 = vld [vmem:[#allocation4 + $0x80] sm:$0xff]
    %v201 = vld [vmem:[#allocation4 + $0x88] sm:$0xff]
    %v202 = vld [vmem:[#allocation4 + $0x90] sm:$0xff]
    %v203 = vld [vmem:[#allocation4 + $0x98] sm:$0xff]
    %v204 = vld [vmem:[#allocation4 + $0xa0] sm:$0xff]
    %v205 = vld [vmem:[#allocation4 + $0xa8] sm:$0xff]
    %v206 = vld [vmem:[#allocation4 + $0xb0] sm:$0xff]
    %v207 = vld [vmem:[#allocation4 + $0xb8] sm:$0xff]
    %v208 = vld [vmem:[#allocation4 + $0xc0] sm:$0xff]
    %v209 = vld [vmem:[#allocation4 + $0xc8] sm:$0xff]
    %v210 = vld [vmem:[#allocation4 + $0xd0] sm:$0xff]
    %v211 = vld [vmem:[#allocation4 + $0xd8] sm:$0xff]
    %v212 = vld [vmem:[#allocation4 + $0xe0] sm:$0xff]
    %v213 = vld [vmem:[#allocation4 + $0xe8] sm:$0xff]
    %v214 = vld [vmem:[#allocation4 + $0xf0] sm:$0xff]
    %v215 = vld [vmem:[#allocation4 + $0xf8] sm:$0xff]
    %v216 = vld [vmem:[#allocation4 + $0x100] sm:$0xff]
    %v217 = vld [vmem:[#allocation4 + $0x108] sm:$0xff]
    %v218 = vld [vmem:[#allocation4 + $0x110] sm:$0xff]
    %v219 = vld [vmem:[#allocation4 + $0x118] sm:$0xff]
    %v220 = vld [vmem:[#allocation4 + $0x120] sm:$0xff]
    %v221 = vld [vmem:[#allocation4 + $0x128] sm:$0xff]
    %v222 = vld [vmem:[#allocation4 + $0x130] sm:$0xff]
    %v223 = vld [vmem:[#allocation4 + $0x138] sm:$0xff]
    %v224 = vld [vmem:[#allocation4 + $0x140] sm:$0xff]
    %v225 = vld [vmem:[#allocation4 + $0x148] sm:$0xff]
    %v226 = vld [vmem:[#allocation4 + $0x150] sm:$0xff]
    %v227 = vld [vmem:[#allocation4 + $0x158] sm:$0xff]
    %v228 = vld [vmem:[#allocation4 + $0x160] sm:$0xff]
    %v229 = vld [vmem:[#allocation4 + $0x168] sm:$0xff]
    %v230 = vld [vmem:[#allocation4 + $0x170] sm:$0xff]
    %v231 = vld [vmem:[#allocation4 + $0x178] sm:$0xff]
    %v232 = vld [vmem:[#allocation4 + $0x180] sm:$0xff]
    %v233 = vld [vmem:[#allocation4 + $0x188] sm:$0xff]
    %v234 = vld [vmem:[#allocation4 + $0x190] sm:$0xff]
    %v235 = vld [vmem:[#allocation4 + $0x198] sm:$0xff]
    %v236 = vld [vmem:[#allocation4 + $0x1a0] sm:$0xff]
    %v237 = vld [vmem:[#allocation4 + $0x1a8] sm:$0xff]
    %v238 = vld [vmem:[#allocation4 + $0x1b0] sm:$0xff]
    %v239 = vld [vmem:[#allocation4 + $0x1b8] sm:$0xff]
    %v240 = vld [vmem:[#allocation4 + $0x1c0] sm:$0xff]
    %v241 = vld [vmem:[#allocation4 + $0x1c8] sm:$0xff]
    %v242 = vld [vmem:[#allocation4 + $0x1d0] sm:$0xff]
    %v243 = vld [vmem:[#allocation4 + $0x1d8] sm:$0xff]
    %v244 = vld [vmem:[#allocation4 + $0x1e0] sm:$0xff]
    %v245 = vld [vmem:[#allocation4 + $0x1e8] sm:$0xff]
    %v246 = vld [vmem:[#allocation4 + $0x1f0] sm:$0xff]
    %v247 = vld [vmem:[#allocation4 + $0x1f8] sm:$0xff]
    %v248 = vld [vmem:[#allocation4 + $0x200] sm:$0xff]
    %v249 = vld [vmem:[#allocation4 + $0x208] sm:$0xff]
    %v250 = vld [vmem:[#allocation4 + $0x210] sm:$0xff]
    %v251 = vld [vmem:[#allocation4 + $0x218] sm:$0xff]
    %v252 = vld [vmem:[#allocation4 + $0x220] sm:$0xff]
    %v253 = vld [vmem:[#allocation4 + $0x228] sm:$0xff]
    %v254 = vld [vmem:[#allocation4 + $0x230] sm:$0xff]
    %v255 = vld [vmem:[#allocation4 + $0x238] sm:$0xff]
    %v256 = vld [vmem:[#allocation4 + $0x240] sm:$0xff]
    %v257 = vld [vmem:[#allocation4 + $0x248] sm:$0xff]
    %v258 = vld [vmem:[#allocation4 + $0x250] sm:$0xff]
    %v259 = vld [vmem:[#allocation4 + $0x258] sm:$0xff]
    %v260 = vld [vmem:[#allocation4 + $0x260] sm:$0xff]
    %v261 = vld [vmem:[#allocation4 + $0x268] sm:$0xff]
    %v262 = vld [vmem:[#allocation4 + $0x270] sm:$0xff]
    %v263 = vld [vmem:[#allocation4 + $0x278] sm:$0xff]
    %v264 = vld [vmem:[#allocation4 + $0x280] sm:$0xff]
    %v265 = vld [vmem:[#allocation4 + $0x288] sm:$0xff]
    %v266 = vld [vmem:[#allocation4 + $0x290] sm:$0xff]
    %v267 = vld [vmem:[#allocation4 + $0x298] sm:$0xff]
    %v268 = vld [vmem:[#allocation4 + $0x2a0] sm:$0xff]
    %v269 = vld [vmem:[#allocation4 + $0x2a8] sm:$0xff]
    %v270 = vld [vmem:[#allocation4 + $0x2b0] sm:$0xff]
    %v271 = vld [vmem:[#allocation4 + $0x2b8] sm:$0xff]
    %v272 = vld [vmem:[#allocation4 + $0x2c0] sm:$0xff]
    %v273 = vld [vmem:[#allocation4 + $0x2c8] sm:$0xff]
    %v274 = vld [vmem:[#allocation4 + $0x2d0] sm:$0xff]
    %v275 = vld [vmem:[#allocation4 + $0x2d8] sm:$0xff]
    %v276 = vld [vmem:[#allocation4 + $0x2e0] sm:$0xff]
    %v277 = vld [vmem:[#allocation4 + $0x2e8] sm:$0xff]
    %v278 = vld [vmem:[#allocation4 + $0x2f0] sm:$0xff]
    %v279 = vld [vmem:[#allocation4 + $0x2f8] sm:$0xff]
    %v280 = vld [vmem:[#allocation4 + $0x300] sm:$0xff]
    %v281 = vld [vmem:[#allocation4 + $0x308] sm:$0xff]
    %v282 = vld [vmem:[#allocation4 + $0x310] sm:$0xff]
    %v283 = vld [vmem:[#allocation4 + $0x318] sm:$0xff]
    %v284 = vld [vmem:[#allocation4 + $0x320] sm:$0xff]
    %v285 = vld [vmem:[#allocation4 + $0x328] sm:$0xff]
    %v286 = vld [vmem:[#allocation4 + $0x330] sm:$0xff]
    %v287 = vld [vmem:[#allocation4 + $0x338] sm:$0xff]
    %v288 = vld [vmem:[#allocation4 + $0x340] sm:$0xff]
    %v289 = vld [vmem:[#allocation4 + $0x348] sm:$0xff]
    %v290 = vld [vmem:[#allocation4 + $0x350] sm:$0xff]
    %v291 = vld [vmem:[#allocation4 + $0x358] sm:$0xff]
    %v292 = vld [vmem:[#allocation4 + $0x360] sm:$0xff]
    %v293 = vld [vmem:[#allocation4 + $0x368] sm:$0xff]
    %v294 = vld [vmem:[#allocation4 + $0x370] sm:$0xff]
    %v295 = vld [vmem:[#allocation4 + $0x378] sm:$0xff]
    %v296 = vld [vmem:[#allocation4 + $0x380] sm:$0xff]
    %v297 = vld [vmem:[#allocation4 + $0x388] sm:$0xff]
    %v298 = vld [vmem:[#allocation4 + $0x390] sm:$0xff]
    %v299 = vld [vmem:[#allocation4 + $0x398] sm:$0xff]
    %v300 = vld [vmem:[#allocation4 + $0x3a0] sm:$0xff]
    %v301 = vld [vmem:[#allocation4 + $0x3a8] sm:$0xff]
    %v302 = vld [vmem:[#allocation4 + $0x3b0] sm:$0xff]
    %v303 = vld [vmem:[#allocation4 + $0x3b8] sm:$0xff]
    %v304 = vld [vmem:[#allocation4 + $0x3c0] sm:$0xff]
    %v305 = vld [vmem:[#allocation4 + $0x3c8] sm:$0xff]
    %v306 = vld [vmem:[#allocation4 + $0x3d0] sm:$0xff]
    %v307 = vld [vmem:[#allocation4 + $0x3d8] sm:$0xff]
    %v308 = vld [vmem:[#allocation4 + $0x3e0] sm:$0xff]
    %v309 = vld [vmem:[#allocation4 + $0x3e8] sm:$0xff]
    %v310 = vld [vmem:[#allocation4 + $0x3f0] sm:$0xff]
    %v311 = vld [vmem:[#allocation4 + $0x3f8] sm:$0xff]
    %v313 = vcombine.high %v183, %v183
    %v315 = vunpack.c.l.s4 1983009808
    %v316 = vunpack.c.0.s8 %v315
    %v317 = vlaneseq
    %v318 = vshrl.u32 %v317, 7
    %v319 = vsub.s32 %v316, %v318
    %v320 = vrot.slane %v183, %v319
    %v322 = vunpack.c.l.s4 1983009808
    %v323 = vunpack.c.0.s8 %v322
    %v324 = vlaneseq
    %v325 = vshrl.u32 %v324, 7
    %v326 = vsub.s32 %v323, %v325
    %v327 = vrot.slane %v313, %v326
    %v328 = vcombine.high %v320, %v320
    %v329 = vcombine.high %v327, %v327
    %v462 = vunpack.c.l.b16 %v184
    %v463 = vunpack.c.h.b16 %v184
    %v464 = vunpack.c.l.b16 %v185
    %v465 = vunpack.c.h.b16 %v185
    %v466 = vunpack.c.l.b16 %v186
    %v467 = vunpack.c.h.b16 %v186
    %v468 = vunpack.c.l.b16 %v187
    %v469 = vunpack.c.h.b16 %v187
    %v470 = vunpack.c.l.b16 %v188
    %v471 = vunpack.c.h.b16 %v188
    %v472 = vunpack.c.l.b16 %v189
    %v473 = vunpack.c.h.b16 %v189
    %v474 = vunpack.c.l.b16 %v190
    %v475 = vunpack.c.h.b16 %v190
    %v476 = vunpack.c.l.b16 %v191
    %v477 = vunpack.c.h.b16 %v191
    %v478 = vunpack.c.l.b16 %v192
    %v479 = vunpack.c.h.b16 %v192
    %v480 = vunpack.c.l.b16 %v193
    %v481 = vunpack.c.h.b16 %v193
    %v482 = vunpack.c.l.b16 %v194
    %v483 = vunpack.c.h.b16 %v194
    %v484 = vunpack.c.l.b16 %v195
    %v485 = vunpack.c.h.b16 %v195
    %v486 = vunpack.c.l.b16 %v196
    %v487 = vunpack.c.h.b16 %v196
    %v488 = vunpack.c.l.b16 %v197
    %v489 = vunpack.c.h.b16 %v197
    %v490 = vunpack.c.l.b16 %v198
    %v491 = vunpack.c.h.b16 %v198
    %v492 = vunpack.c.l.b16 %v199
    %v493 = vunpack.c.h.b16 %v199
    %v494 = vunpack.c.l.b16 %v200
    %v495 = vunpack.c.h.b16 %v200
    %v496 = vunpack.c.l.b16 %v201
    %v497 = vunpack.c.h.b16 %v201
    %v498 = vunpack.c.l.b16 %v202
    %v499 = vunpack.c.h.b16 %v202
    %v500 = vunpack.c.l.b16 %v203
    %v501 = vunpack.c.h.b16 %v203
    %v502 = vunpack.c.l.b16 %v204
    %v503 = vunpack.c.h.b16 %v204
    %v504 = vunpack.c.l.b16 %v205
    %v505 = vunpack.c.h.b16 %v205
    %v506 = vunpack.c.l.b16 %v206
    %v507 = vunpack.c.h.b16 %v206
    %v508 = vunpack.c.l.b16 %v207
    %v509 = vunpack.c.h.b16 %v207
    %v510 = vunpack.c.l.b16 %v208
    %v511 = vunpack.c.h.b16 %v208
    %v512 = vunpack.c.l.b16 %v209
    %v513 = vunpack.c.h.b16 %v209
    %v514 = vunpack.c.l.b16 %v210
    %v515 = vunpack.c.h.b16 %v210
    %v516 = vunpack.c.l.b16 %v211
    %v517 = vunpack.c.h.b16 %v211
    %v518 = vunpack.c.l.b16 %v212
    %v519 = vunpack.c.h.b16 %v212
    %v520 = vunpack.c.l.b16 %v213
    %v521 = vunpack.c.h.b16 %v213
    %v522 = vunpack.c.l.b16 %v214
    %v523 = vunpack.c.h.b16 %v214
    %v524 = vunpack.c.l.b16 %v215
    %v525 = vunpack.c.h.b16 %v215
    %v526 = vunpack.c.l.b16 %v216
    %v527 = vunpack.c.h.b16 %v216
    %v528 = vunpack.c.l.b16 %v217
    %v529 = vunpack.c.h.b16 %v217
    %v530 = vunpack.c.l.b16 %v218
    %v531 = vunpack.c.h.b16 %v218
    %v532 = vunpack.c.l.b16 %v219
    %v533 = vunpack.c.h.b16 %v219
    %v534 = vunpack.c.l.b16 %v220
    %v535 = vunpack.c.h.b16 %v220
    %v536 = vunpack.c.l.b16 %v221
    %v537 = vunpack.c.h.b16 %v221
    %v538 = vunpack.c.l.b16 %v222
    %v539 = vunpack.c.h.b16 %v222
    %v540 = vunpack.c.l.b16 %v223
    %v541 = vunpack.c.h.b16 %v223
    %v542 = vunpack.c.l.b16 %v224
    %v543 = vunpack.c.h.b16 %v224
    %v544 = vunpack.c.l.b16 %v225
    %v545 = vunpack.c.h.b16 %v225
    %v546 = vunpack.c.l.b16 %v226
    %v547 = vunpack.c.h.b16 %v226
    %v548 = vunpack.c.l.b16 %v227
    %v549 = vunpack.c.h.b16 %v227
    %v550 = vunpack.c.l.b16 %v228
    %v551 = vunpack.c.h.b16 %v228
    %v552 = vunpack.c.l.b16 %v229
    %v553 = vunpack.c.h.b16 %v229
    %v554 = vunpack.c.l.b16 %v230
    %v555 = vunpack.c.h.b16 %v230
    %v556 = vunpack.c.l.b16 %v231
    %v557 = vunpack.c.h.b16 %v231
    %v558 = vunpack.c.l.b16 %v232
    %v559 = vunpack.c.h.b16 %v232
    %v560 = vunpack.c.l.b16 %v233
    %v561 = vunpack.c.h.b16 %v233
    %v562 = vunpack.c.l.b16 %v234
    %v563 = vunpack.c.h.b16 %v234
    %v564 = vunpack.c.l.b16 %v235
    %v565 = vunpack.c.h.b16 %v235
    %v566 = vunpack.c.l.b16 %v236
    %v567 = vunpack.c.h.b16 %v236
    %v568 = vunpack.c.l.b16 %v237
    %v569 = vunpack.c.h.b16 %v237
    %v570 = vunpack.c.l.b16 %v238
    %v571 = vunpack.c.h.b16 %v238
    %v572 = vunpack.c.l.b16 %v239
    %v573 = vunpack.c.h.b16 %v239
    %v574 = vunpack.c.l.b16 %v240
    %v575 = vunpack.c.h.b16 %v240
    %v576 = vunpack.c.l.b16 %v241
    %v577 = vunpack.c.h.b16 %v241
    %v578 = vunpack.c.l.b16 %v242
    %v579 = vunpack.c.h.b16 %v242
    %v580 = vunpack.c.l.b16 %v243
    %v581 = vunpack.c.h.b16 %v243
    %v582 = vunpack.c.l.b16 %v244
    %v583 = vunpack.c.h.b16 %v244
    %v584 = vunpack.c.l.b16 %v245
    %v585 = vunpack.c.h.b16 %v245
    %v586 = vunpack.c.l.b16 %v246
    %v587 = vunpack.c.h.b16 %v246
    %v588 = vunpack.c.l.b16 %v247
    %v589 = vunpack.c.h.b16 %v247
    %v590 = vunpack.c.l.b16 %v248
    %v591 = vunpack.c.h.b16 %v248
    %v592 = vunpack.c.l.b16 %v249
    %v593 = vunpack.c.h.b16 %v249
    %v594 = vunpack.c.l.b16 %v250
    %v595 = vunpack.c.h.b16 %v250
    %v596 = vunpack.c.l.b16 %v251
    %v597 = vunpack.c.h.b16 %v251
    %v598 = vunpack.c.l.b16 %v252
    %v599 = vunpack.c.h.b16 %v252
    %v600 = vunpack.c.l.b16 %v253
    %v601 = vunpack.c.h.b16 %v253
    %v602 = vunpack.c.l.b16 %v254
    %v603 = vunpack.c.h.b16 %v254
    %v604 = vunpack.c.l.b16 %v255
    %v605 = vunpack.c.h.b16 %v255
    %v606 = vunpack.c.l.b16 %v256
    %v607 = vunpack.c.h.b16 %v256
    %v608 = vunpack.c.l.b16 %v257
    %v609 = vunpack.c.h.b16 %v257
    %v610 = vunpack.c.l.b16 %v258
    %v611 = vunpack.c.h.b16 %v258
    %v612 = vunpack.c.l.b16 %v259
    %v613 = vunpack.c.h.b16 %v259
    %v614 = vunpack.c.l.b16 %v260
    %v615 = vunpack.c.h.b16 %v260
    %v616 = vunpack.c.l.b16 %v261
    %v617 = vunpack.c.h.b16 %v261
    %v618 = vunpack.c.l.b16 %v262
    %v619 = vunpack.c.h.b16 %v262
    %v620 = vunpack.c.l.b16 %v263
    %v621 = vunpack.c.h.b16 %v263
    %v622 = vunpack.c.l.b16 %v264
    %v623 = vunpack.c.h.b16 %v264
    %v624 = vunpack.c.l.b16 %v265
    %v625 = vunpack.c.h.b16 %v265
    %v626 = vunpack.c.l.b16 %v266
    %v627 = vunpack.c.h.b16 %v266
    %v628 = vunpack.c.l.b16 %v267
    %v629 = vunpack.c.h.b16 %v267
    %v630 = vunpack.c.l.b16 %v268
    %v631 = vunpack.c.h.b16 %v268
    %v632 = vunpack.c.l.b16 %v269
    %v633 = vunpack.c.h.b16 %v269
    %v634 = vunpack.c.l.b16 %v270
    %v635 = vunpack.c.h.b16 %v270
    %v636 = vunpack.c.l.b16 %v271
    %v637 = vunpack.c.h.b16 %v271
    %v638 = vunpack.c.l.b16 %v272
    %v639 = vunpack.c.h.b16 %v272
    %v640 = vunpack.c.l.b16 %v273
    %v641 = vunpack.c.h.b16 %v273
    %v642 = vunpack.c.l.b16 %v274
    %v643 = vunpack.c.h.b16 %v274
    %v644 = vunpack.c.l.b16 %v275
    %v645 = vunpack.c.h.b16 %v275
    %v646 = vunpack.c.l.b16 %v276
    %v647 = vunpack.c.h.b16 %v276
    %v648 = vunpack.c.l.b16 %v277
    %v649 = vunpack.c.h.b16 %v277
    %v650 = vunpack.c.l.b16 %v278
    %v651 = vunpack.c.h.b16 %v278
    %v652 = vunpack.c.l.b16 %v279
    %v653 = vunpack.c.h.b16 %v279
    %v654 = vunpack.c.l.b16 %v280
    %v655 = vunpack.c.h.b16 %v280
    %v656 = vunpack.c.l.b16 %v281
    %v657 = vunpack.c.h.b16 %v281
    %v658 = vunpack.c.l.b16 %v282
    %v659 = vunpack.c.h.b16 %v282
    %v660 = vunpack.c.l.b16 %v283
    %v661 = vunpack.c.h.b16 %v283
    %v662 = vunpack.c.l.b16 %v284
    %v663 = vunpack.c.h.b16 %v284
    %v664 = vunpack.c.l.b16 %v285
    %v665 = vunpack.c.h.b16 %v285
    %v666 = vunpack.c.l.b16 %v286
    %v667 = vunpack.c.h.b16 %v286
    %v668 = vunpack.c.l.b16 %v287
    %v669 = vunpack.c.h.b16 %v287
    %v670 = vunpack.c.l.b16 %v288
    %v671 = vunpack.c.h.b16 %v288
    %v672 = vunpack.c.l.b16 %v289
    %v673 = vunpack.c.h.b16 %v289
    %v674 = vunpack.c.l.b16 %v290
    %v675 = vunpack.c.h.b16 %v290
    %v676 = vunpack.c.l.b16 %v291
    %v677 = vunpack.c.h.b16 %v291
    %v678 = vunpack.c.l.b16 %v292
    %v679 = vunpack.c.h.b16 %v292
    %v680 = vunpack.c.l.b16 %v293
    %v681 = vunpack.c.h.b16 %v293
    %v682 = vunpack.c.l.b16 %v294
    %v683 = vunpack.c.h.b16 %v294
    %v684 = vunpack.c.l.b16 %v295
    %v685 = vunpack.c.h.b16 %v295
    %v686 = vunpack.c.l.b16 %v296
    %v687 = vunpack.c.h.b16 %v296
    %v688 = vunpack.c.l.b16 %v297
    %v689 = vunpack.c.h.b16 %v297
    %v690 = vunpack.c.l.b16 %v298
    %v691 = vunpack.c.h.b16 %v298
    %v692 = vunpack.c.l.b16 %v299
    %v693 = vunpack.c.h.b16 %v299
    %v694 = vunpack.c.l.b16 %v300
    %v695 = vunpack.c.h.b16 %v300
    %v696 = vunpack.c.l.b16 %v301
    %v697 = vunpack.c.h.b16 %v301
    %v698 = vunpack.c.l.b16 %v302
    %v699 = vunpack.c.h.b16 %v302
    %v700 = vunpack.c.l.b16 %v303
    %v701 = vunpack.c.h.b16 %v303
    %v702 = vunpack.c.l.b16 %v304
    %v703 = vunpack.c.h.b16 %v304
    %v704 = vunpack.c.l.b16 %v305
    %v705 = vunpack.c.h.b16 %v305
    %v706 = vunpack.c.l.b16 %v306
    %v707 = vunpack.c.h.b16 %v306
    %v708 = vunpack.c.l.b16 %v307
    %v709 = vunpack.c.h.b16 %v307
    %v710 = vunpack.c.l.b16 %v308
    %v711 = vunpack.c.h.b16 %v308
    %v712 = vunpack.c.l.b16 %v309
    %v713 = vunpack.c.h.b16 %v309
    %v714 = vunpack.c.l.b16 %v310
    %v715 = vunpack.c.h.b16 %v310
    %v716 = vunpack.c.l.b16 %v311
    %v717 = vunpack.c.h.b16 %v311
    %v718 = vpack.c.b16 %v466, %v462
    %v719 = vpack.c.b16 %v467, %v463
    %v720 = vpack.c.b16 %v468, %v464
    %v721 = vpack.c.b16 %v469, %v465
    %v722 = vpack.c.b16 %v474, %v470
    %v723 = vpack.c.b16 %v475, %v471
    %v724 = vpack.c.b16 %v476, %v472
    %v725 = vpack.c.b16 %v477, %v473
    %v726 = vpack.c.b16 %v482, %v478
    %v727 = vpack.c.b16 %v483, %v479
    %v728 = vpack.c.b16 %v484, %v480
    %v729 = vpack.c.b16 %v485, %v481
    %v730 = vpack.c.b16 %v490, %v486
    %v731 = vpack.c.b16 %v491, %v487
    %v732 = vpack.c.b16 %v492, %v488
    %v733 = vpack.c.b16 %v493, %v489
    %v734 = vpack.c.b16 %v498, %v494
    %v735 = vpack.c.b16 %v499, %v495
    %v736 = vpack.c.b16 %v500, %v496
    %v737 = vpack.c.b16 %v501, %v497
    %v738 = vpack.c.b16 %v506, %v502
    %v739 = vpack.c.b16 %v507, %v503
    %v740 = vpack.c.b16 %v508, %v504
    %v741 = vpack.c.b16 %v509, %v505
    %v742 = vpack.c.b16 %v514, %v510
    %v743 = vpack.c.b16 %v515, %v511
    %v744 = vpack.c.b16 %v516, %v512
    %v745 = vpack.c.b16 %v517, %v513
    %v746 = vpack.c.b16 %v522, %v518
    %v747 = vpack.c.b16 %v523, %v519
    %v748 = vpack.c.b16 %v524, %v520
    %v749 = vpack.c.b16 %v525, %v521
    %v750 = vpack.c.b16 %v530, %v526
    %v751 = vpack.c.b16 %v531, %v527
    %v752 = vpack.c.b16 %v532, %v528
    %v753 = vpack.c.b16 %v533, %v529
    %v754 = vpack.c.b16 %v538, %v534
    %v755 = vpack.c.b16 %v539, %v535
    %v756 = vpack.c.b16 %v540, %v536
    %v757 = vpack.c.b16 %v541, %v537
    %v758 = vpack.c.b16 %v546, %v542
    %v759 = vpack.c.b16 %v547, %v543
    %v760 = vpack.c.b16 %v548, %v544
    %v761 = vpack.c.b16 %v549, %v545
    %v762 = vpack.c.b16 %v554, %v550
    %v763 = vpack.c.b16 %v555, %v551
    %v764 = vpack.c.b16 %v556, %v552
    %v765 = vpack.c.b16 %v557, %v553
    %v766 = vpack.c.b16 %v562, %v558
    %v767 = vpack.c.b16 %v563, %v559
    %v768 = vpack.c.b16 %v564, %v560
    %v769 = vpack.c.b16 %v565, %v561
    %v770 = vpack.c.b16 %v570, %v566
    %v771 = vpack.c.b16 %v571, %v567
    %v772 = vpack.c.b16 %v572, %v568
    %v773 = vpack.c.b16 %v573, %v569
    %v774 = vpack.c.b16 %v578, %v574
    %v775 = vpack.c.b16 %v579, %v575
    %v776 = vpack.c.b16 %v580, %v576
    %v777 = vpack.c.b16 %v581, %v577
    %v778 = vpack.c.b16 %v586, %v582
    %v779 = vpack.c.b16 %v587, %v583
    %v780 = vpack.c.b16 %v588, %v584
    %v781 = vpack.c.b16 %v589, %v585
    %v782 = vpack.c.b16 %v594, %v590
    %v783 = vpack.c.b16 %v595, %v591
    %v784 = vpack.c.b16 %v596, %v592
    %v785 = vpack.c.b16 %v597, %v593
    %v786 = vpack.c.b16 %v602, %v598
    %v787 = vpack.c.b16 %v603, %v599
    %v788 = vpack.c.b16 %v604, %v600
    %v789 = vpack.c.b16 %v605, %v601
    %v790 = vpack.c.b16 %v610, %v606
    %v791 = vpack.c.b16 %v611, %v607
    %v792 = vpack.c.b16 %v612, %v608
    %v793 = vpack.c.b16 %v613, %v609
    %v794 = vpack.c.b16 %v618, %v614
    %v795 = vpack.c.b16 %v619, %v615
    %v796 = vpack.c.b16 %v620, %v616
    %v797 = vpack.c.b16 %v621, %v617
    %v798 = vpack.c.b16 %v626, %v622
    %v799 = vpack.c.b16 %v627, %v623
    %v800 = vpack.c.b16 %v628, %v624
    %v801 = vpack.c.b16 %v629, %v625
    %v802 = vpack.c.b16 %v634, %v630
    %v803 = vpack.c.b16 %v635, %v631
    %v804 = vpack.c.b16 %v636, %v632
    %v805 = vpack.c.b16 %v637, %v633
    %v806 = vpack.c.b16 %v642, %v638
    %v807 = vpack.c.b16 %v643, %v639
    %v808 = vpack.c.b16 %v644, %v640
    %v809 = vpack.c.b16 %v645, %v641
    %v810 = vpack.c.b16 %v650, %v646
    %v811 = vpack.c.b16 %v651, %v647
    %v812 = vpack.c.b16 %v652, %v648
    %v813 = vpack.c.b16 %v653, %v649
    %v814 = vpack.c.b16 %v658, %v654
    %v815 = vpack.c.b16 %v659, %v655
    %v816 = vpack.c.b16 %v660, %v656
    %v817 = vpack.c.b16 %v661, %v657
    %v818 = vpack.c.b16 %v666, %v662
    %v819 = vpack.c.b16 %v667, %v663
    %v820 = vpack.c.b16 %v668, %v664
    %v821 = vpack.c.b16 %v669, %v665
    %v822 = vpack.c.b16 %v674, %v670
    %v823 = vpack.c.b16 %v675, %v671
    %v824 = vpack.c.b16 %v676, %v672
    %v825 = vpack.c.b16 %v677, %v673
    %v826 = vpack.c.b16 %v682, %v678
    %v827 = vpack.c.b16 %v683, %v679
    %v828 = vpack.c.b16 %v684, %v680
    %v829 = vpack.c.b16 %v685, %v681
    %v830 = vpack.c.b16 %v690, %v686
    %v831 = vpack.c.b16 %v691, %v687
    %v832 = vpack.c.b16 %v692, %v688
    %v833 = vpack.c.b16 %v693, %v689
    %v834 = vpack.c.b16 %v698, %v694
    %v835 = vpack.c.b16 %v699, %v695
    %v836 = vpack.c.b16 %v700, %v696
    %v837 = vpack.c.b16 %v701, %v697
    %v838 = vpack.c.b16 %v706, %v702
    %v839 = vpack.c.b16 %v707, %v703
    %v840 = vpack.c.b16 %v708, %v704
    %v841 = vpack.c.b16 %v709, %v705
    %v842 = vpack.c.b16 %v714, %v710
    %v843 = vpack.c.b16 %v715, %v711
    %v844 = vpack.c.b16 %v716, %v712
    %v845 = vpack.c.b16 %v717, %v713
    %974 = vmatprep.subr.bf16.mxu0 %v719
    %975 = vmatpush1.bf16.msra.mxu0 %v718
    %976 = vmatprep.subr.bf16.mxu0 %v723
    %977 = vmatpush1.bf16.msra.mxu0 %v722
    %978 = vmatprep.subr.bf16.mxu0 %v727
    %979 = vmatpush1.bf16.msra.mxu0 %v726
    %980 = vmatprep.subr.bf16.mxu0 %v731
    %981 = vmatpush1.bf16.msra.mxu0 %v730
    %982 = vmatprep.subr.bf16.mxu0 %v735
    %983 = vmatpush1.bf16.msra.mxu0 %v734
    %984 = vmatprep.subr.bf16.mxu0 %v739
    %985 = vmatpush1.bf16.msra.mxu0 %v738
    %986 = vmatprep.subr.bf16.mxu0 %v743
    %987 = vmatpush1.bf16.msra.mxu0 %v742
    %988 = vmatprep.subr.bf16.mxu0 %v747
    %989 = vmatpush1.bf16.msra.mxu0 %v746
    %990 = vmatprep.subr.bf16.mxu0 %v751
    %991 = vmatpush1.bf16.msra.mxu0 %v750
    %992 = vmatprep.subr.bf16.mxu0 %v755
    %993 = vmatpush1.bf16.msra.mxu0 %v754
    %994 = vmatprep.subr.bf16.mxu0 %v759
    %995 = vmatpush1.bf16.msra.mxu0 %v758
    %996 = vmatprep.subr.bf16.mxu0 %v763
    %997 = vmatpush1.bf16.msra.mxu0 %v762
    %998 = vmatprep.subr.bf16.mxu0 %v767
    %999 = vmatpush1.bf16.msra.mxu0 %v766
    %1000 = vmatprep.subr.bf16.mxu0 %v771
    %1001 = vmatpush1.bf16.msra.mxu0 %v770
    %1002 = vmatprep.subr.bf16.mxu0 %v775
    %1003 = vmatpush1.bf16.msra.mxu0 %v774
    %1004 = vmatprep.subr.bf16.mxu0 %v779
    %1005 = vmatpush1.bf16.msra.mxu0 %v778
    %1006 = vmatprep.mubr.bf16.mxu0 %v328
    %1007 = vmatmul.mubr.bf16.gmra.mrb[0].mxu0 %v320
    %v1008 = vpop.f32.mrb[0].mxu0
    %v1009 = vadd.f32 0.0, %v1008
    %v1010 = vpop.f32.mrb[0].mxu0
    %v1011 = vadd.f32 0.0, %v1010
    %v1012 = vpop.f32.mrb[0].mxu0
    %v1013 = vpop.f32.mrb[0].mxu0
    %1014 = vdwg.mxu0
    %1015 = vmatprep.subr.bf16.mxu0 %v783
    %1016 = vmatpush1.bf16.msra.mxu0 %v782
    %1017 = vmatprep.subr.bf16.mxu0 %v787
    %1018 = vmatpush1.bf16.msra.mxu0 %v786
    %1019 = vmatprep.subr.bf16.mxu0 %v791
    %1020 = vmatpush1.bf16.msra.mxu0 %v790
    %1021 = vmatprep.subr.bf16.mxu0 %v795
    %1022 = vmatpush1.bf16.msra.mxu0 %v794
    %1023 = vmatprep.subr.bf16.mxu0 %v799
    %1024 = vmatpush1.bf16.msra.mxu0 %v798
    %1025 = vmatprep.subr.bf16.mxu0 %v803
    %1026 = vmatpush1.bf16.msra.mxu0 %v802
    %1027 = vmatprep.subr.bf16.mxu0 %v807
    %1028 = vmatpush1.bf16.msra.mxu0 %v806
    %1029 = vmatprep.subr.bf16.mxu0 %v811
    %1030 = vmatpush1.bf16.msra.mxu0 %v810
    %1031 = vmatprep.subr.bf16.mxu0 %v815
    %1032 = vmatpush1.bf16.msra.mxu0 %v814
    %1033 = vmatprep.subr.bf16.mxu0 %v819
    %1034 = vmatpush1.bf16.msra.mxu0 %v818
    %1035 = vmatprep.subr.bf16.mxu0 %v823
    %1036 = vmatpush1.bf16.msra.mxu0 %v822
    %1037 = vmatprep.subr.bf16.mxu0 %v827
    %1038 = vmatpush1.bf16.msra.mxu0 %v826
    %1039 = vmatprep.subr.bf16.mxu0 %v831
    %1040 = vmatpush1.bf16.msra.mxu0 %v830
    %1041 = vmatprep.subr.bf16.mxu0 %v835
    %1042 = vmatpush1.bf16.msra.mxu0 %v834
    %1043 = vmatprep.subr.bf16.mxu0 %v839
    %1044 = vmatpush1.bf16.msra.mxu0 %v838
    %1045 = vmatprep.subr.bf16.mxu0 %v843
    %1046 = vmatpush1.bf16.msra.mxu0 %v842
    %1047 = vmatprep.mubr.bf16.mxu0 %v329
    %1048 = vmatmul.mubr.bf16.gmra.mrb[0].mxu0 %v327
    %v1049 = vpop.f32.mrb[0].mxu0
    %v1050 = vadd.f32 %v1009, %v1049
    %v1051 = vpop.f32.mrb[0].mxu0
    %v1052 = vadd.f32 %v1011, %v1051
    %v1053 = vpop.f32.mrb[0].mxu0
    %v1054 = vpop.f32.mrb[0].mxu0
    %1055 = vdwg.mxu0
    %1056 = vmatprep.subr.bf16.mxu0 %v721
    %1057 = vmatpush1.bf16.msra.mxu0 %v720
    %1058 = vmatprep.subr.bf16.mxu0 %v725
    %1059 = vmatpush1.bf16.msra.mxu0 %v724
    %1060 = vmatprep.subr.bf16.mxu0 %v729
    %1061 = vmatpush1.bf16.msra.mxu0 %v728
    %1062 = vmatprep.subr.bf16.mxu0 %v733
    %1063 = vmatpush1.bf16.msra.mxu0 %v732
    %1064 = vmatprep.subr.bf16.mxu0 %v737
    %1065 = vmatpush1.bf16.msra.mxu0 %v736
    %1066 = vmatprep.subr.bf16.mxu0 %v741
    %1067 = vmatpush1.bf16.msra.mxu0 %v740
    %1068 = vmatprep.subr.bf16.mxu0 %v745
    %1069 = vmatpush1.bf16.msra.mxu0 %v744
    %1070 = vmatprep.subr.bf16.mxu0 %v749
    %1071 = vmatpush1.bf16.msra.mxu0 %v748
    %1072 = vmatprep.subr.bf16.mxu0 %v753
    %1073 = vmatpush1.bf16.msra.mxu0 %v752
    %1074 = vmatprep.subr.bf16.mxu0 %v757
    %1075 = vmatpush1.bf16.msra.mxu0 %v756
    %1076 = vmatprep.subr.bf16.mxu0 %v761
    %1077 = vmatpush1.bf16.msra.mxu0 %v760
    %1078 = vmatprep.subr.bf16.mxu0 %v765
    %1079 = vmatpush1.bf16.msra.mxu0 %v764
    %1080 = vmatprep.subr.bf16.mxu0 %v769
    %1081 = vmatpush1.bf16.msra.mxu0 %v768
    %1082 = vmatprep.subr.bf16.mxu0 %v773
    %1083 = vmatpush1.bf16.msra.mxu0 %v772
    %1084 = vmatprep.subr.bf16.mxu0 %v777
    %1085 = vmatpush1.bf16.msra.mxu0 %v776
    %1086 = vmatprep.subr.bf16.mxu0 %v781
    %1087 = vmatpush1.bf16.msra.mxu0 %v780
    %1088 = vmatprep.mubr.bf16.mxu0 %v328
    %1089 = vmatmul.mubr.bf16.gmra.mrb[0].mxu0 %v320
    %v1090 = vpop.f32.mrb[0].mxu0
    %v1091 = vadd.f32 0.0, %v1090
    %v1092 = vpop.f32.mrb[0].mxu0
    %v1093 = vadd.f32 0.0, %v1092
    %v1094 = vpop.f32.mrb[0].mxu0
    %v1095 = vpop.f32.mrb[0].mxu0
    %1096 = vdwg.mxu0
    %1097 = vmatprep.subr.bf16.mxu0 %v785
    %1098 = vmatpush1.bf16.msra.mxu0 %v784
    %1099 = vmatprep.subr.bf16.mxu0 %v789
    %1100 = vmatpush1.bf16.msra.mxu0 %v788
    %1101 = vmatprep.subr.bf16.mxu0 %v793
    %1102 = vmatpush1.bf16.msra.mxu0 %v792
    %1103 = vmatprep.subr.bf16.mxu0 %v797
    %1104 = vmatpush1.bf16.msra.mxu0 %v796
    %1105 = vmatprep.subr.bf16.mxu0 %v801
    %1106 = vmatpush1.bf16.msra.mxu0 %v800
    %1107 = vmatprep.subr.bf16.mxu0 %v805
    %1108 = vmatpush1.bf16.msra.mxu0 %v804
    %1109 = vmatprep.subr.bf16.mxu0 %v809
    %1110 = vmatpush1.bf16.msra.mxu0 %v808
    %1111 = vmatprep.subr.bf16.mxu0 %v813
    %1112 = vmatpush1.bf16.msra.mxu0 %v812
    %1113 = vmatprep.subr.bf16.mxu0 %v817
    %1114 = vmatpush1.bf16.msra.mxu0 %v816
    %1115 = vmatprep.subr.bf16.mxu0 %v821
    %1116 = vmatpush1.bf16.msra.mxu0 %v820
    %1117 = vmatprep.subr.bf16.mxu0 %v825
    %1118 = vmatpush1.bf16.msra.mxu0 %v824
    %1119 = vmatprep.subr.bf16.mxu0 %v829
    %1120 = vmatpush1.bf16.msra.mxu0 %v828
    %1121 = vmatprep.subr.bf16.mxu0 %v833
    %1122 = vmatpush1.bf16.msra.mxu0 %v832
    %1123 = vmatprep.subr.bf16.mxu0 %v837
    %1124 = vmatpush1.bf16.msra.mxu0 %v836
    %1125 = vmatprep.subr.bf16.mxu0 %v841
    %1126 = vmatpush1.bf16.msra.mxu0 %v840
    %1127 = vmatprep.subr.bf16.mxu0 %v845
    %1128 = vmatpush1.bf16.msra.mxu0 %v844
    %1129 = vmatprep.mubr.bf16.mxu0 %v329
    %1130 = vmatmul.mubr.bf16.gmra.mrb[0].mxu0 %v327
    %v1131 = vpop.f32.mrb[0].mxu0
    %v1132 = vadd.f32 %v1091, %v1131
    %v1133 = vpop.f32.mrb[0].mxu0
    %v1134 = vadd.f32 %v1093, %v1133
    %v1135 = vpop.f32.mrb[0].mxu0
    %v1136 = vpop.f32.mrb[0].mxu0
    %1137 = vdwg.mxu0
    %v1139 = vcombine.high %v54, %v54
    %v1141 = vunpack.c.l.s4 1983009808
    %v1142 = vunpack.c.0.s8 %v1141
    %v1143 = vlaneseq
    %v1144 = vshrl.u32 %v1143, 7
    %v1145 = vsub.s32 %v1142, %v1144
    %v1146 = vrot.slane %v54, %v1145
    %v1148 = vunpack.c.l.s4 1983009808
    %v1149 = vunpack.c.0.s8 %v1148
    %v1150 = vlaneseq
    %v1151 = vshrl.u32 %v1150, 7
    %v1152 = vsub.s32 %v1149, %v1151
    %v1153 = vrot.slane %v1139, %v1152
    %v1154 = vcombine.high %v1146, %v1146
    %v1155 = vcombine.high %v1153, %v1153
    %v1288 = vunpack.c.l.b16 %v55
    %v1289 = vunpack.c.h.b16 %v55
    %v1290 = vunpack.c.l.b16 %v56
    %v1291 = vunpack.c.h.b16 %v56
    %v1292 = vunpack.c.l.b16 %v57
    %v1293 = vunpack.c.h.b16 %v57
    %v1294 = vunpack.c.l.b16 %v58
    %v1295 = vunpack.c.h.b16 %v58
    %v1296 = vunpack.c.l.b16 %v59
    %v1297 = vunpack.c.h.b16 %v59
    %v1298 = vunpack.c.l.b16 %v60
    %v1299 = vunpack.c.h.b16 %v60
    %v1300 = vunpack.c.l.b16 %v61
    %v1301 = vunpack.c.h.b16 %v61
    %v1302 = vunpack.c.l.b16 %v62
    %v1303 = vunpack.c.h.b16 %v62
    %v1304 = vunpack.c.l.b16 %v63
    %v1305 = vunpack.c.h.b16 %v63
    %v1306 = vunpack.c.l.b16 %v64
    %v1307 = vunpack.c.h.b16 %v64
    %v1308 = vunpack.c.l.b16 %v65
    %v1309 = vunpack.c.h.b16 %v65
    %v1310 = vunpack.c.l.b16 %v66
    %v1311 = vunpack.c.h.b16 %v66
    %v1312 = vunpack.c.l.b16 %v67
    %v1313 = vunpack.c.h.b16 %v67
    %v1314 = vunpack.c.l.b16 %v68
    %v1315 = vunpack.c.h.b16 %v68
    %v1316 = vunpack.c.l.b16 %v69
    %v1317 = vunpack.c.h.b16 %v69
    %v1318 = vunpack.c.l.b16 %v70
    %v1319 = vunpack.c.h.b16 %v70
    %v1320 = vunpack.c.l.b16 %v71
    %v1321 = vunpack.c.h.b16 %v71
    %v1322 = vunpack.c.l.b16 %v72
    %v1323 = vunpack.c.h.b16 %v72
    %v1324 = vunpack.c.l.b16 %v73
    %v1325 = vunpack.c.h.b16 %v73
    %v1326 = vunpack.c.l.b16 %v74
    %v1327 = vunpack.c.h.b16 %v74
    %v1328 = vunpack.c.l.b16 %v75
    %v1329 = vunpack.c.h.b16 %v75
    %v1330 = vunpack.c.l.b16 %v76
    %v1331 = vunpack.c.h.b16 %v76
    %v1332 = vunpack.c.l.b16 %v77
    %v1333 = vunpack.c.h.b16 %v77
    %v1334 = vunpack.c.l.b16 %v78
    %v1335 = vunpack.c.h.b16 %v78
    %v1336 = vunpack.c.l.b16 %v79
    %v1337 = vunpack.c.h.b16 %v79
    %v1338 = vunpack.c.l.b16 %v80
    %v1339 = vunpack.c.h.b16 %v80
    %v1340 = vunpack.c.l.b16 %v81
    %v1341 = vunpack.c.h.b16 %v81
    %v1342 = vunpack.c.l.b16 %v82
    %v1343 = vunpack.c.h.b16 %v82
    %v1344 = vunpack.c.l.b16 %v83
    %v1345 = vunpack.c.h.b16 %v83
    %v1346 = vunpack.c.l.b16 %v84
    %v1347 = vunpack.c.h.b16 %v84
    %v1348 = vunpack.c.l.b16 %v85
    %v1349 = vunpack.c.h.b16 %v85
    %v1350 = vunpack.c.l.b16 %v86
    %v1351 = vunpack.c.h.b16 %v86
    %v1352 = vunpack.c.l.b16 %v87
    %v1353 = vunpack.c.h.b16 %v87
    %v1354 = vunpack.c.l.b16 %v88
    %v1355 = vunpack.c.h.b16 %v88
    %v1356 = vunpack.c.l.b16 %v89
    %v1357 = vunpack.c.h.b16 %v89
    %v1358 = vunpack.c.l.b16 %v90
    %v1359 = vunpack.c.h.b16 %v90
    %v1360 = vunpack.c.l.b16 %v91
    %v1361 = vunpack.c.h.b16 %v91
    %v1362 = vunpack.c.l.b16 %v92
    %v1363 = vunpack.c.h.b16 %v92
    %v1364 = vunpack.c.l.b16 %v93
    %v1365 = vunpack.c.h.b16 %v93
    %v1366 = vunpack.c.l.b16 %v94
    %v1367 = vunpack.c.h.b16 %v94
    %v1368 = vunpack.c.l.b16 %v95
    %v1369 = vunpack.c.h.b16 %v95
    %v1370 = vunpack.c.l.b16 %v96
    %v1371 = vunpack.c.h.b16 %v96
    %v1372 = vunpack.c.l.b16 %v97
    %v1373 = vunpack.c.h.b16 %v97
    %v1374 = vunpack.c.l.b16 %v98
    %v1375 = vunpack.c.h.b16 %v98
    %v1376 = vunpack.c.l.b16 %v99
    %v1377 = vunpack.c.h.b16 %v99
    %v1378 = vunpack.c.l.b16 %v100
    %v1379 = vunpack.c.h.b16 %v100
    %v1380 = vunpack.c.l.b16 %v101
    %v1381 = vunpack.c.h.b16 %v101
    %v1382 = vunpack.c.l.b16 %v102
    %v1383 = vunpack.c.h.b16 %v102
    %v1384 = vunpack.c.l.b16 %v103
    %v1385 = vunpack.c.h.b16 %v103
    %v1386 = vunpack.c.l.b16 %v104
    %v1387 = vunpack.c.h.b16 %v104
    %v1388 = vunpack.c.l.b16 %v105
    %v1389 = vunpack.c.h.b16 %v105
    %v1390 = vunpack.c.l.b16 %v106
    %v1391 = vunpack.c.h.b16 %v106
    %v1392 = vunpack.c.l.b16 %v107
    %v1393 = vunpack.c.h.b16 %v107
    %v1394 = vunpack.c.l.b16 %v108
    %v1395 = vunpack.c.h.b16 %v108
    %v1396 = vunpack.c.l.b16 %v109
    %v1397 = vunpack.c.h.b16 %v109
    %v1398 = vunpack.c.l.b16 %v110
    %v1399 = vunpack.c.h.b16 %v110
    %v1400 = vunpack.c.l.b16 %v111
    %v1401 = vunpack.c.h.b16 %v111
    %v1402 = vunpack.c.l.b16 %v112
    %v1403 = vunpack.c.h.b16 %v112
    %v1404 = vunpack.c.l.b16 %v113
    %v1405 = vunpack.c.h.b16 %v113
    %v1406 = vunpack.c.l.b16 %v114
    %v1407 = vunpack.c.h.b16 %v114
    %v1408 = vunpack.c.l.b16 %v115
    %v1409 = vunpack.c.h.b16 %v115
    %v1410 = vunpack.c.l.b16 %v116
    %v1411 = vunpack.c.h.b16 %v116
    %v1412 = vunpack.c.l.b16 %v117
    %v1413 = vunpack.c.h.b16 %v117
    %v1414 = vunpack.c.l.b16 %v118
    %v1415 = vunpack.c.h.b16 %v118
    %v1416 = vunpack.c.l.b16 %v119
    %v1417 = vunpack.c.h.b16 %v119
    %v1418 = vunpack.c.l.b16 %v120
    %v1419 = vunpack.c.h.b16 %v120
    %v1420 = vunpack.c.l.b16 %v121
    %v1421 = vunpack.c.h.b16 %v121
    %v1422 = vunpack.c.l.b16 %v122
    %v1423 = vunpack.c.h.b16 %v122
    %v1424 = vunpack.c.l.b16 %v123
    %v1425 = vunpack.c.h.b16 %v123
    %v1426 = vunpack.c.l.b16 %v124
    %v1427 = vunpack.c.h.b16 %v124
    %v1428 = vunpack.c.l.b16 %v125
    %v1429 = vunpack.c.h.b16 %v125
    %v1430 = vunpack.c.l.b16 %v126
    %v1431 = vunpack.c.h.b16 %v126
    %v1432 = vunpack.c.l.b16 %v127
    %v1433 = vunpack.c.h.b16 %v127
    %v1434 = vunpack.c.l.b16 %v128
    %v1435 = vunpack.c.h.b16 %v128
    %v1436 = vunpack.c.l.b16 %v129
    %v1437 = vunpack.c.h.b16 %v129
    %v1438 = vunpack.c.l.b16 %v130
    %v1439 = vunpack.c.h.b16 %v130
    %v1440 = vunpack.c.l.b16 %v131
    %v1441 = vunpack.c.h.b16 %v131
    %v1442 = vunpack.c.l.b16 %v132
    %v1443 = vunpack.c.h.b16 %v132
    %v1444 = vunpack.c.l.b16 %v133
    %v1445 = vunpack.c.h.b16 %v133
    %v1446 = vunpack.c.l.b16 %v134
    %v1447 = vunpack.c.h.b16 %v134
    %v1448 = vunpack.c.l.b16 %v135
    %v1449 = vunpack.c.h.b16 %v135
    %v1450 = vunpack.c.l.b16 %v136
    %v1451 = vunpack.c.h.b16 %v136
    %v1452 = vunpack.c.l.b16 %v137
    %v1453 = vunpack.c.h.b16 %v137
    %v1454 = vunpack.c.l.b16 %v138
    %v1455 = vunpack.c.h.b16 %v138
    %v1456 = vunpack.c.l.b16 %v139
    %v1457 = vunpack.c.h.b16 %v139
    %v1458 = vunpack.c.l.b16 %v140
    %v1459 = vunpack.c.h.b16 %v140
    %v1460 = vunpack.c.l.b16 %v141
    %v1461 = vunpack.c.h.b16 %v141
    %v1462 = vunpack.c.l.b16 %v142
    %v1463 = vunpack.c.h.b16 %v142
    %v1464 = vunpack.c.l.b16 %v143
    %v1465 = vunpack.c.h.b16 %v143
    %v1466 = vunpack.c.l.b16 %v144
    %v1467 = vunpack.c.h.b16 %v144
    %v1468 = vunpack.c.l.b16 %v145
    %v1469 = vunpack.c.h.b16 %v145
    %v1470 = vunpack.c.l.b16 %v146
    %v1471 = vunpack.c.h.b16 %v146
    %v1472 = vunpack.c.l.b16 %v147
    %v1473 = vunpack.c.h.b16 %v147
    %v1474 = vunpack.c.l.b16 %v148
    %v1475 = vunpack.c.h.b16 %v148
    %v1476 = vunpack.c.l.b16 %v149
    %v1477 = vunpack.c.h.b16 %v149
    %v1478 = vunpack.c.l.b16 %v150
    %v1479 = vunpack.c.h.b16 %v150
    %v1480 = vunpack.c.l.b16 %v151
    %v1481 = vunpack.c.h.b16 %v151
    %v1482 = vunpack.c.l.b16 %v152
    %v1483 = vunpack.c.h.b16 %v152
    %v1484 = vunpack.c.l.b16 %v153
    %v1485 = vunpack.c.h.b16 %v153
    %v1486 = vunpack.c.l.b16 %v154
    %v1487 = vunpack.c.h.b16 %v154
    %v1488 = vunpack.c.l.b16 %v155
    %v1489 = vunpack.c.h.b16 %v155
    %v1490 = vunpack.c.l.b16 %v156
    %v1491 = vunpack.c.h.b16 %v156
    %v1492 = vunpack.c.l.b16 %v157
    %v1493 = vunpack.c.h.b16 %v157
    %v1494 = vunpack.c.l.b16 %v158
    %v1495 = vunpack.c.h.b16 %v158
    %v1496 = vunpack.c.l.b16 %v159
    %v1497 = vunpack.c.h.b16 %v159
    %v1498 = vunpack.c.l.b16 %v160
    %v1499 = vunpack.c.h.b16 %v160
    %v1500 = vunpack.c.l.b16 %v161
    %v1501 = vunpack.c.h.b16 %v161
    %v1502 = vunpack.c.l.b16 %v162
    %v1503 = vunpack.c.h.b16 %v162
    %v1504 = vunpack.c.l.b16 %v163
    %v1505 = vunpack.c.h.b16 %v163
    %v1506 = vunpack.c.l.b16 %v164
    %v1507 = vunpack.c.h.b16 %v164
    %v1508 = vunpack.c.l.b16 %v165
    %v1509 = vunpack.c.h.b16 %v165
    %v1510 = vunpack.c.l.b16 %v166
    %v1511 = vunpack.c.h.b16 %v166
    %v1512 = vunpack.c.l.b16 %v167
    %v1513 = vunpack.c.h.b16 %v167
    %v1514 = vunpack.c.l.b16 %v168
    %v1515 = vunpack.c.h.b16 %v168
    %v1516 = vunpack.c.l.b16 %v169
    %v1517 = vunpack.c.h.b16 %v169
    %v1518 = vunpack.c.l.b16 %v170
    %v1519 = vunpack.c.h.b16 %v170
    %v1520 = vunpack.c.l.b16 %v171
    %v1521 = vunpack.c.h.b16 %v171
    %v1522 = vunpack.c.l.b16 %v172
    %v1523 = vunpack.c.h.b16 %v172
    %v1524 = vunpack.c.l.b16 %v173
    %v1525 = vunpack.c.h.b16 %v173
    %v1526 = vunpack.c.l.b16 %v174
    %v1527 = vunpack.c.h.b16 %v174
    %v1528 = vunpack.c.l.b16 %v175
    %v1529 = vunpack.c.h.b16 %v175
    %v1530 = vunpack.c.l.b16 %v176
    %v1531 = vunpack.c.h.b16 %v176
    %v1532 = vunpack.c.l.b16 %v177
    %v1533 = vunpack.c.h.b16 %v177
    %v1534 = vunpack.c.l.b16 %v178
    %v1535 = vunpack.c.h.b16 %v178
    %v1536 = vunpack.c.l.b16 %v179
    %v1537 = vunpack.c.h.b16 %v179
    %v1538 = vunpack.c.l.b16 %v180
    %v1539 = vunpack.c.h.b16 %v180
    %v1540 = vunpack.c.l.b16 %v181
    %v1541 = vunpack.c.h.b16 %v181
    %v1542 = vunpack.c.l.b16 %v182
    %v1543 = vunpack.c.h.b16 %v182
    %v1544 = vpack.c.b16 %v1292, %v1288
    %v1545 = vpack.c.b16 %v1293, %v1289
    %v1546 = vpack.c.b16 %v1294, %v1290
    %v1547 = vpack.c.b16 %v1295, %v1291
    %v1548 = vpack.c.b16 %v1300, %v1296
    %v1549 = vpack.c.b16 %v1301, %v1297
    %v1550 = vpack.c.b16 %v1302, %v1298
    %v1551 = vpack.c.b16 %v1303, %v1299
    %v1552 = vpack.c.b16 %v1308, %v1304
    %v1553 = vpack.c.b16 %v1309, %v1305
    %v1554 = vpack.c.b16 %v1310, %v1306
    %v1555 = vpack.c.b16 %v1311, %v1307
    %v1556 = vpack.c.b16 %v1316, %v1312
    %v1557 = vpack.c.b16 %v1317, %v1313
    %v1558 = vpack.c.b16 %v1318, %v1314
    %v1559 = vpack.c.b16 %v1319, %v1315
    %v1560 = vpack.c.b16 %v1324, %v1320
    %v1561 = vpack.c.b16 %v1325, %v1321
    %v1562 = vpack.c.b16 %v1326, %v1322
    %v1563 = vpack.c.b16 %v1327, %v1323
    %v1564 = vpack.c.b16 %v1332, %v1328
    %v1565 = vpack.c.b16 %v1333, %v1329
    %v1566 = vpack.c.b16 %v1334, %v1330
    %v1567 = vpack.c.b16 %v1335, %v1331
    %v1568 = vpack.c.b16 %v1340, %v1336
    %v1569 = vpack.c.b16 %v1341, %v1337
    %v1570 = vpack.c.b16 %v1342, %v1338
    %v1571 = vpack.c.b16 %v1343, %v1339
    %v1572 = vpack.c.b16 %v1348, %v1344
    %v1573 = vpack.c.b16 %v1349, %v1345
    %v1574 = vpack.c.b16 %v1350, %v1346
    %v1575 = vpack.c.b16 %v1351, %v1347
    %v1576 = vpack.c.b16 %v1356, %v1352
    %v1577 = vpack.c.b16 %v1357, %v1353
    %v1578 = vpack.c.b16 %v1358, %v1354
    %v1579 = vpack.c.b16 %v1359, %v1355
    %v1580 = vpack.c.b16 %v1364, %v1360
    %v1581 = vpack.c.b16 %v1365, %v1361
    %v1582 = vpack.c.b16 %v1366, %v1362
    %v1583 = vpack.c.b16 %v1367, %v1363
    %v1584 = vpack.c.b16 %v1372, %v1368
    %v1585 = vpack.c.b16 %v1373, %v1369
    %v1586 = vpack.c.b16 %v1374, %v1370
    %v1587 = vpack.c.b16 %v1375, %v1371
    %v1588 = vpack.c.b16 %v1380, %v1376
    %v1589 = vpack.c.b16 %v1381, %v1377
    %v1590 = vpack.c.b16 %v1382, %v1378
    %v1591 = vpack.c.b16 %v1383, %v1379
    %v1592 = vpack.c.b16 %v1388, %v1384
    %v1593 = vpack.c.b16 %v1389, %v1385
    %v1594 = vpack.c.b16 %v1390, %v1386
    %v1595 = vpack.c.b16 %v1391, %v1387
    %v1596 = vpack.c.b16 %v1396, %v1392
    %v1597 = vpack.c.b16 %v1397, %v1393
    %v1598 = vpack.c.b16 %v1398, %v1394
    %v1599 = vpack.c.b16 %v1399, %v1395
    %v1600 = vpack.c.b16 %v1404, %v1400
    %v1601 = vpack.c.b16 %v1405, %v1401
    %v1602 = vpack.c.b16 %v1406, %v1402
    %v1603 = vpack.c.b16 %v1407, %v1403
    %v1604 = vpack.c.b16 %v1412, %v1408
    %v1605 = vpack.c.b16 %v1413, %v1409
    %v1606 = vpack.c.b16 %v1414, %v1410
    %v1607 = vpack.c.b16 %v1415, %v1411
    %v1608 = vpack.c.b16 %v1420, %v1416
    %v1609 = vpack.c.b16 %v1421, %v1417
    %v1610 = vpack.c.b16 %v1422, %v1418
    %v1611 = vpack.c.b16 %v1423, %v1419
    %v1612 = vpack.c.b16 %v1428, %v1424
    %v1613 = vpack.c.b16 %v1429, %v1425
    %v1614 = vpack.c.b16 %v1430, %v1426
    %v1615 = vpack.c.b16 %v1431, %v1427
    %v1616 = vpack.c.b16 %v1436, %v1432
    %v1617 = vpack.c.b16 %v1437, %v1433
    %v1618 = vpack.c.b16 %v1438, %v1434
    %v1619 = vpack.c.b16 %v1439, %v1435
    %v1620 = vpack.c.b16 %v1444, %v1440
    %v1621 = vpack.c.b16 %v1445, %v1441
    %v1622 = vpack.c.b16 %v1446, %v1442
    %v1623 = vpack.c.b16 %v1447, %v1443
    %v1624 = vpack.c.b16 %v1452, %v1448
    %v1625 = vpack.c.b16 %v1453, %v1449
    %v1626 = vpack.c.b16 %v1454, %v1450
    %v1627 = vpack.c.b16 %v1455, %v1451
    %v1628 = vpack.c.b16 %v1460, %v1456
    %v1629 = vpack.c.b16 %v1461, %v1457
    %v1630 = vpack.c.b16 %v1462, %v1458
    %v1631 = vpack.c.b16 %v1463, %v1459
    %v1632 = vpack.c.b16 %v1468, %v1464
    %v1633 = vpack.c.b16 %v1469, %v1465
    %v1634 = vpack.c.b16 %v1470, %v1466
    %v1635 = vpack.c.b16 %v1471, %v1467
    %v1636 = vpack.c.b16 %v1476, %v1472
    %v1637 = vpack.c.b16 %v1477, %v1473
    %v1638 = vpack.c.b16 %v1478, %v1474
    %v1639 = vpack.c.b16 %v1479, %v1475
    %v1640 = vpack.c.b16 %v1484, %v1480
    %v1641 = vpack.c.b16 %v1485, %v1481
    %v1642 = vpack.c.b16 %v1486, %v1482
    %v1643 = vpack.c.b16 %v1487, %v1483
    %v1644 = vpack.c.b16 %v1492, %v1488
    %v1645 = vpack.c.b16 %v1493, %v1489
    %v1646 = vpack.c.b16 %v1494, %v1490
    %v1647 = vpack.c.b16 %v1495, %v1491
    %v1648 = vpack.c.b16 %v1500, %v1496
    %v1649 = vpack.c.b16 %v1501, %v1497
    %v1650 = vpack.c.b16 %v1502, %v1498
    %v1651 = vpack.c.b16 %v1503, %v1499
    %v1652 = vpack.c.b16 %v1508, %v1504
    %v1653 = vpack.c.b16 %v1509, %v1505
    %v1654 = vpack.c.b16 %v1510, %v1506
    %v1655 = vpack.c.b16 %v1511, %v1507
    %v1656 = vpack.c.b16 %v1516, %v1512
    %v1657 = vpack.c.b16 %v1517, %v1513
    %v1658 = vpack.c.b16 %v1518, %v1514
    %v1659 = vpack.c.b16 %v1519, %v1515
    %v1660 = vpack.c.b16 %v1524, %v1520
    %v1661 = vpack.c.b16 %v1525, %v1521
    %v1662 = vpack.c.b16 %v1526, %v1522
    %v1663 = vpack.c.b16 %v1527, %v1523
    %v1664 = vpack.c.b16 %v1532, %v1528
    %v1665 = vpack.c.b16 %v1533, %v1529
    %v1666 = vpack.c.b16 %v1534, %v1530
    %v1667 = vpack.c.b16 %v1535, %v1531
    %v1668 = vpack.c.b16 %v1540, %v1536
    %v1669 = vpack.c.b16 %v1541, %v1537
    %v1670 = vpack.c.b16 %v1542, %v1538
    %v1671 = vpack.c.b16 %v1543, %v1539
    %1800 = vmatprep.subr.bf16.mxu0 %v1545
    %1801 = vmatpush1.bf16.msra.mxu0 %v1544
    %1802 = vmatprep.subr.bf16.mxu0 %v1549
    %1803 = vmatpush1.bf16.msra.mxu0 %v1548
    %1804 = vmatprep.subr.bf16.mxu0 %v1553
    %1805 = vmatpush1.bf16.msra.mxu0 %v1552
    %1806 = vmatprep.subr.bf16.mxu0 %v1557
    %1807 = vmatpush1.bf16.msra.mxu0 %v1556
    %1808 = vmatprep.subr.bf16.mxu0 %v1561
    %1809 = vmatpush1.bf16.msra.mxu0 %v1560
    %1810 = vmatprep.subr.bf16.mxu0 %v1565
    %1811 = vmatpush1.bf16.msra.mxu0 %v1564
    %1812 = vmatprep.subr.bf16.mxu0 %v1569
    %1813 = vmatpush1.bf16.msra.mxu0 %v1568
    %1814 = vmatprep.subr.bf16.mxu0 %v1573
    %1815 = vmatpush1.bf16.msra.mxu0 %v1572
    %1816 = vmatprep.subr.bf16.mxu0 %v1577
    %1817 = vmatpush1.bf16.msra.mxu0 %v1576
    %1818 = vmatprep.subr.bf16.mxu0 %v1581
    %1819 = vmatpush1.bf16.msra.mxu0 %v1580
    %1820 = vmatprep.subr.bf16.mxu0 %v1585
    %1821 = vmatpush1.bf16.msra.mxu0 %v1584
    %1822 = vmatprep.subr.bf16.mxu0 %v1589
    %1823 = vmatpush1.bf16.msra.mxu0 %v1588
    %1824 = vmatprep.subr.bf16.mxu0 %v1593
    %1825 = vmatpush1.bf16.msra.mxu0 %v1592
    %1826 = vmatprep.subr.bf16.mxu0 %v1597
    %1827 = vmatpush1.bf16.msra.mxu0 %v1596
    %1828 = vmatprep.subr.bf16.mxu0 %v1601
    %1829 = vmatpush1.bf16.msra.mxu0 %v1600
    %1830 = vmatprep.subr.bf16.mxu0 %v1605
    %1831 = vmatpush1.bf16.msra.mxu0 %v1604
    %1832 = vmatprep.mubr.bf16.mxu0 %v1154
    %1833 = vmatmul.mubr.bf16.gmra.mrb[0].mxu0 %v1146
    %v1834 = vpop.f32.mrb[0].mxu0
    %v1835 = vadd.f32 %v1050, %v1834
    %v1836 = vpop.f32.mrb[0].mxu0
    %v1837 = vadd.f32 %v1052, %v1836
    %v1838 = vpop.f32.mrb[0].mxu0
    %v1839 = vpop.f32.mrb[0].mxu0
    %1840 = vdwg.mxu0
    %1841 = vmatprep.subr.bf16.mxu0 %v1609
    %1842 = vmatpush1.bf16.msra.mxu0 %v1608
    %1843 = vmatprep.subr.bf16.mxu0 %v1613
    %1844 = vmatpush1.bf16.msra.mxu0 %v1612
    %1845 = vmatprep.subr.bf16.mxu0 %v1617
    %1846 = vmatpush1.bf16.msra.mxu0 %v1616
    %1847 = vmatprep.subr.bf16.mxu0 %v1621
    %1848 = vmatpush1.bf16.msra.mxu0 %v1620
    %1849 = vmatprep.subr.bf16.mxu0 %v1625
    %1850 = vmatpush1.bf16.msra.mxu0 %v1624
    %1851 = vmatprep.subr.bf16.mxu0 %v1629
    %1852 = vmatpush1.bf16.msra.mxu0 %v1628
    %1853 = vmatprep.subr.bf16.mxu0 %v1633
    %1854 = vmatpush1.bf16.msra.mxu0 %v1632
    %1855 = vmatprep.subr.bf16.mxu0 %v1637
    %1856 = vmatpush1.bf16.msra.mxu0 %v1636
    %1857 = vmatprep.subr.bf16.mxu0 %v1641
    %1858 = vmatpush1.bf16.msra.mxu0 %v1640
    %1859 = vmatprep.subr.bf16.mxu0 %v1645
    %1860 = vmatpush1.bf16.msra.mxu0 %v1644
    %1861 = vmatprep.subr.bf16.mxu0 %v1649
    %1862 = vmatpush1.bf16.msra.mxu0 %v1648
    %1863 = vmatprep.subr.bf16.mxu0 %v1653
    %1864 = vmatpush1.bf16.msra.mxu0 %v1652
    %1865 = vmatprep.subr.bf16.mxu0 %v1657
    %1866 = vmatpush1.bf16.msra.mxu0 %v1656
    %1867 = vmatprep.subr.bf16.mxu0 %v1661
    %1868 = vmatpush1.bf16.msra.mxu0 %v1660
    %1869 = vmatprep.subr.bf16.mxu0 %v1665
    %1870 = vmatpush1.bf16.msra.mxu0 %v1664
    %1871 = vmatprep.subr.bf16.mxu0 %v1669
    %1872 = vmatpush1.bf16.msra.mxu0 %v1668
    %1873 = vmatprep.mubr.bf16.mxu0 %v1155
    %1874 = vmatmul.mubr.bf16.gmra.mrb[0].mxu0 %v1153
    %v1875 = vpop.f32.mrb[0].mxu0
    %v1876 = vadd.f32 %v1835, %v1875
    %v1877 = vpop.f32.mrb[0].mxu0
    %v1878 = vadd.f32 %v1837, %v1877
    %v1879 = vpop.f32.mrb[0].mxu0
    %v1880 = vpop.f32.mrb[0].mxu0
    %1881 = vdwg.mxu0
    %1882 = vmatprep.subr.bf16.mxu0 %v1547
    %1883 = vmatpush1.bf16.msra.mxu0 %v1546
    %1884 = vmatprep.subr.bf16.mxu0 %v1551
    %1885 = vmatpush1.bf16.msra.mxu0 %v1550
    %1886 = vmatprep.subr.bf16.mxu0 %v1555
    %1887 = vmatpush1.bf16.msra.mxu0 %v1554
    %1888 = vmatprep.subr.bf16.mxu0 %v1559
    %1889 = vmatpush1.bf16.msra.mxu0 %v1558
    %1890 = vmatprep.subr.bf16.mxu0 %v1563
    %1891 = vmatpush1.bf16.msra.mxu0 %v1562
    %1892 = vmatprep.subr.bf16.mxu0 %v1567
    %1893 = vmatpush1.bf16.msra.mxu0 %v1566
    %1894 = vmatprep.subr.bf16.mxu0 %v1571
    %1895 = vmatpush1.bf16.msra.mxu0 %v1570
    %1896 = vmatprep.subr.bf16.mxu0 %v1575
    %1897 = vmatpush1.bf16.msra.mxu0 %v1574
    %1898 = vmatprep.subr.bf16.mxu0 %v1579
    %1899 = vmatpush1.bf16.msra.mxu0 %v1578
    %1900 = vmatprep.subr.bf16.mxu0 %v1583
    %1901 = vmatpush1.bf16.msra.mxu0 %v1582
    %1902 = vmatprep.subr.bf16.mxu0 %v1587
    %1903 = vmatpush1.bf16.msra.mxu0 %v1586
    %1904 = vmatprep.subr.bf16.mxu0 %v1591
    %1905 = vmatpush1.bf16.msra.mxu0 %v1590
    %1906 = vmatprep.subr.bf16.mxu0 %v1595
    %1907 = vmatpush1.bf16.msra.mxu0 %v1594
    %1908 = vmatprep.subr.bf16.mxu0 %v1599
    %1909 = vmatpush1.bf16.msra.mxu0 %v1598
    %1910 = vmatprep.subr.bf16.mxu0 %v1603
    %1911 = vmatpush1.bf16.msra.mxu0 %v1602
    %1912 = vmatprep.subr.bf16.mxu0 %v1607
    %1913 = vmatpush1.bf16.msra.mxu0 %v1606
    %1914 = vmatprep.mubr.bf16.mxu0 %v1154
    %1915 = vmatmul.mubr.bf16.gmra.mrb[0].mxu0 %v1146
    %v1916 = vpop.f32.mrb[0].mxu0
    %v1917 = vadd.f32 %v1132, %v1916
    %v1918 = vpop.f32.mrb[0].mxu0
    %v1919 = vadd.f32 %v1134, %v1918
    %v1920 = vpop.f32.mrb[0].mxu0
    %v1921 = vpop.f32.mrb[0].mxu0
    %1922 = vdwg.mxu0
    %1923 = vmatprep.subr.bf16.mxu0 %v1611
    %1924 = vmatpush1.bf16.msra.mxu0 %v1610
    %1925 = vmatprep.subr.bf16.mxu0 %v1615
    %1926 = vmatpush1.bf16.msra.mxu0 %v1614
    %1927 = vmatprep.subr.bf16.mxu0 %v1619
    %1928 = vmatpush1.bf16.msra.mxu0 %v1618
    %1929 = vmatprep.subr.bf16.mxu0 %v1623
    %1930 = vmatpush1.bf16.msra.mxu0 %v1622
    %1931 = vmatprep.subr.bf16.mxu0 %v1627
    %1932 = vmatpush1.bf16.msra.mxu0 %v1626
    %1933 = vmatprep.subr.bf16.mxu0 %v1631
    %1934 = vmatpush1.bf16.msra.mxu0 %v1630
    %1935 = vmatprep.subr.bf16.mxu0 %v1635
    %1936 = vmatpush1.bf16.msra.mxu0 %v1634
    %1937 = vmatprep.subr.bf16.mxu0 %v1639
    %1938 = vmatpush1.bf16.msra.mxu0 %v1638
    %1939 = vmatprep.subr.bf16.mxu0 %v1643
    %1940 = vmatpush1.bf16.msra.mxu0 %v1642
    %1941 = vmatprep.subr.bf16.mxu0 %v1647
    %1942 = vmatpush1.bf16.msra.mxu0 %v1646
    %1943 = vmatprep.subr.bf16.mxu0 %v1651
    %1944 = vmatpush1.bf16.msra.mxu0 %v1650
    %1945 = vmatprep.subr.bf16.mxu0 %v1655
    %1946 = vmatpush1.bf16.msra.mxu0 %v1654
    %1947 = vmatprep.subr.bf16.mxu0 %v1659
    %1948 = vmatpush1.bf16.msra.mxu0 %v1658
    %1949 = vmatprep.subr.bf16.mxu0 %v1663
    %1950 = vmatpush1.bf16.msra.mxu0 %v1662
    %1951 = vmatprep.subr.bf16.mxu0 %v1667
    %1952 = vmatpush1.bf16.msra.mxu0 %v1666
    %1953 = vmatprep.subr.bf16.mxu0 %v1671
    %1954 = vmatpush1.bf16.msra.mxu0 %v1670
    %1955 = vmatprep.mubr.bf16.mxu0 %v1155
    %1956 = vmatmul.mubr.bf16.gmra.mrb[0].mxu0 %v1153
    %v1957 = vpop.f32.mrb[0].mxu0
    %v1958 = vadd.f32 %v1917, %v1957
    %v1959 = vpop.f32.mrb[0].mxu0
    %v1960 = vadd.f32 %v1919, %v1959
    %v1961 = vpop.f32.mrb[0].mxu0
    %v1962 = vpop.f32.mrb[0].mxu0
    %1963 = vdwg.mxu0
    %v1964 = vld [vmem:[%s4] sm:$0xf]
    %v1966 = vlaneseq
    %v1967 = vshrl.u32 %v1966, 7
    %v1968 = vsub.s32 0, %v1967
    %v1969 = vrot.slane %v1964, %v1968
    %v1970 = vlaneseq
    %v1971 = vshrl.u32 %v1970, 7
    %v1972 = vsub.s32 1, %v1971
    %v1973 = vrot.slane %v1964, %v1972
    %v1974 = vlaneseq
    %v1975 = vshrl.u32 %v1974, 7
    %v1976 = vsub.s32 2, %v1975
    %v1977 = vrot.slane %v1964, %v1976
    %v1978 = vlaneseq
    %v1979 = vshrl.u32 %v1978, 7
    %v1980 = vsub.s32 3, %v1979
    %v1981 = vrot.slane %v1964, %v1980
    %v1986 = vadd.f32 %v1876, %v1969
    %v1987 = vadd.f32 %v1878, %v1973
    %v1988 = vadd.f32 %v1958, %v1977
    %v1989 = vadd.f32 %v1960, %v1981
    %v1990 = vld [vmem:[%s5] sm:$0x3]
    %v1992 = vlaneseq
    %v1993 = vshrl.u32 %v1992, 7
    %v1994 = vsub.s32 0, %v1993
    %v1995 = vrot.slane %v1990, %v1994
    %v1996 = vlaneseq
    %v1997 = vshrl.u32 %v1996, 7
    %v1998 = vsub.s32 1, %v1997
    %v1999 = vrot.slane %v1990, %v1998
    %v2002 = vmul.f32 %v1986, %v1995
    %v2003 = vmul.f32 %v1987, %v1999
    %v2004 = vld [vmem:[%s6] sm:$0x3]
    %v2006 = vlaneseq
    %v2007 = vshrl.u32 %v2006, 7
    %v2008 = vsub.s32 0, %v2007
    %v2009 = vrot.slane %v2004, %v2008
    %v2010 = vlaneseq
    %v2011 = vshrl.u32 %v2010, 7
    %v2012 = vsub.s32 1, %v2011
    %v2013 = vrot.slane %v2004, %v2012
    %v2016 = vadd.f32 %v2002, %v2009
    %v2017 = vadd.f32 %v2003, %v2013
    %v2018 = vxor.u32 %v2016, 2147483648
    %v2019 = vxor.u32 %v2017, 2147483648
    %v2020 = vmul.f32 %v2018, 1.442695
    %v2021 = vpow.pop %v2020
    %v2022 = vmul.f32 %v2019, 1.442695
    %v2023 = vpow.pop %v2022
    %v2024 = vadd.f32 %v2021, 1.0
    %v2025 = vadd.f32 %v2023, 1.0
    %v2026 = vrcp.pop %v2024
    %v2027 = vmul.f32 1.0, %v2026
    %v2028 = vrcp.pop %v2025
    %v2029 = vmul.f32 1.0, %v2028
    %v2030 = vmul.f32 %v1988, %v1988
    %vm2031 = vcmask 1043456
    %v2032 = vsel %vm2031, %v2030, 0.0
    %2033 = vadd.xlane.f32.xlu0 %v2032
    %v2034 = vpop.xlane.xlu0 %2033
    %v2035 = vmax.f32 %v2034, 1e-24
    %v2036 = vrsqrt.pop %v2035
    %v2037 = vmul.f32 %v1988, %v2036
    %v2038 = vmul.f32 %v2037, %v2027
    %v2039 = vmul.f32 %v1989, %v1989
    %v2040 = vsel %vm2031, %v2039, 0.0
    %2041 = vadd.xlane.f32.xlu0 %v2040
    %v2042 = vpop.xlane.xlu0 %2041
    %v2043 = vmax.f32 %v2042, 1e-24
    %v2044 = vrsqrt.pop %v2043
    %v2045 = vmul.f32 %v1989, %v2044
    %v2046 = vmul.f32 %v2045, %v2029
    %v2047 = vadd.f32 %v2038, %v2046
    %v2048 = vmul.f32 %v2047, %v2047
    %v2049 = vsel %vm2031, %v2048, 0.0
    %2050 = vadd.xlane.f32.xlu0 %v2049
    %v2051 = vpop.xlane.xlu0 %2050
    %v2052 = vmax.f32 %v2051, 1e-24
    %v2053 = vrsqrt.pop %v2052
    %v2054 = vmul.f32 %v2047, %v2053
    %2055 = vst [vmem:[%s7] sm:$0xf] %v2054
    // Predicated region
    $region38: #{bert_mlm_forward.5} parent=1 // pred_check
      _
    $region39: #{bert_mlm_forward.5} parent=1 // pred_check_branch
      %2057 = sbr.rel (0) target = $region41
    $region40: #{bert_mlm_forward.5} parent=1 // pred_region
      _
    $region41: #{bert_mlm_forward.5} parent=1 // pred_fallthru
      _
    // Predicated region
    $region42: #{bert_mlm_forward.5} parent=1 // pred_check
      _
    $region43: #{bert_mlm_forward.5} parent=1 // pred_check_branch
      %2059 = sbr.rel (0) target = $region45
    $region44: #{bert_mlm_forward.5} parent=1 // pred_region
      _
    $region45: #{bert_mlm_forward.5} parent=1 // pred_fallthru
      _
    %2060 = vsyncpa [#allocation3], 1
    %2061 = vsyncpa [#allocation5], 1

</llo_original>
